<compile_context>
chip_gen: v6e
topology: v6e:2x2x1
jax: 0.10.0
libtpu: 0.0.40
codegen_flags: <defaults>
</compile_context>

<pallas_src>
import functools

import jax
import jax.numpy as jnp
from jax.experimental import pallas as pl
from jax.experimental.pallas import tpu as pltpu


def _make_drqn_kernel(num_layers, num_fc, hidden, T):
    H = hidden

    def kernel(*refs):
        idx = 0
        x_ref = refs[idx]; idx += 1
        wih0_ref = refs[idx]; idx += 1
        whh0_ref = refs[idx]; idx += 1
        b0_ref = refs[idx]; idx += 1
        stk_refs = refs[idx:idx + 2 * (num_layers - 1)]; idx += 2 * (num_layers - 1)
        fc_refs = refs[idx:idx + 2 * num_fc]; idx += 2 * num_fc
        out_ref = refs[idx]

        # Load everything once (all weights are tiny and VMEM-resident).
        x = x_ref[...]                                    # (T, F)
        wih0 = wih0_ref[...]                              # (F, 4H)
        whh0 = whh0_ref[...]                              # (H, 4H)
        b0 = b0_ref[...]                                  # (1, 4H) merged bias
        wcat = [stk_refs[2 * k][...] for k in range(num_layers - 1)]     # (H, 8H)
        bstk = [stk_refs[2 * k + 1][...] for k in range(num_layers - 1)]  # (1, 4H)

        # Hoisted layer-0 input projection for all T steps: one M=T matmul.
        xb0 = jnp.dot(x, wih0, preferred_element_type=jnp.float32) + b0   # (T, 4H)

        # Recurrent state as traced values (unrolled loop; compiler regalloc).
        h = [jnp.zeros((1, H), jnp.float32) for _ in range(num_layers)]
        c = [jnp.zeros((1, H), jnp.float32) for _ in range(num_layers)]

        # Hoisted broadcast/iota constants (JAX does not CSE broadcast_in_dim).
        row2_is0 = jax.lax.broadcasted_iota(jnp.int32, (2, 1), 0) == 0    # (2, 1)
        rowsT = jax.lax.broadcasted_iota(jnp.int32, (T, 1), 0)            # (T, 1)
        h_top = jnp.zeros((T, H), jnp.float32)

        def lstm_cell(gates, c_prev):
            # PyTorch gate order: i, f, g, o.  One sigmoid + one tanh over the
            # full (1, 4H) row (EUP), then lane slices.  NOTE: 4H == 128 here
            # so the slices are lane-aligned; other H stay correct but the
            # slices get more expensive.
            sg = jax.nn.sigmoid(gates)
            tg = jnp.tanh(gates)
            i_g = sg[:, 0:H]
            f_g = sg[:, H:2 * H]
            g_g = tg[:, 2 * H:3 * H]
            o_g = sg[:, 3 * H:4 * H]
            c_new = f_g * c_prev + i_g * g_g
            h_new = o_g * jnp.tanh(c_new)
            return h_new, c_new

        for t in range(T):
            # Layer 0: input contribution precomputed in xb0; one matmul on
            # the dependent chain.
            gates = xb0[t:t + 1, :] + jnp.dot(
                h[0], whh0, preferred_element_type=jnp.float32)
            h[0], c[0] = lstm_cell(gates, c[0])

            # Stacked layers: single fused dot per step.
            for l in range(1, num_layers):
                k = l - 1
                # (2, H) sublane stack: row0 = h_{l-1}(t), row1 = h_l(t-1).
                stacked = jnp.where(row2_is0, h[l - 1], h[l])
                res = jnp.dot(stacked, wcat[k],
                              preferred_element_type=jnp.float32)          # (2, 8H)
                gates = (res[0:1, 0:4 * H]      # h_{l-1} @ Wih^T
                         + res[1:2, 4 * H:8 * H]  # h_l     @ Whh^T
                         + bstk[k])
                h[l], c[l] = lstm_cell(gates, c[l])

            # Collect top-layer hidden row t via one-hot row mask (stays in
            # vregs; off the gate critical path).
            h_top = jnp.where(rowsT == t, h[num_layers - 1], h_top)

        # Batched MLP head over all T rows at once; single lane-dense output
        # store (one writeback DMA).
        y = h_top                                          # (T, H)
        for j in range(num_fc):
            w_t = fc_refs[2 * j][...]                      # (in, out)
            bb = fc_refs[2 * j + 1][...]                   # (1, out)
            y = jnp.dot(y, w_t, preferred_element_type=jnp.float32) + bb
            if j < num_fc - 1:
                y = jnp.maximum(y, 0.0)
        out_ref[...] = y                                   # (T, A)

    return kernel


def init_params(key, state_shape, num_actions, hidden, num_layers, mlp_layers):
    """Deterministic synthetic parameters with PyTorch-like shapes."""
    flat = functools.reduce(lambda a, b: a * b, state_shape)
    keys = list(jax.random.split(key, 4 * num_layers + 2 * (len(mlp_layers) + 1)))
    kit = iter(keys)

    lstm_params = []
    in_dim = flat
    scale = 1.0 / (hidden ** 0.5)
    for _ in range(num_layers):
        wih = jax.random.uniform(next(kit), (4 * hidden, in_dim), jnp.float32, -scale, scale)
        whh = jax.random.uniform(next(kit), (4 * hidden, hidden), jnp.float32, -scale, scale)
        bih = jax.random.uniform(next(kit), (4 * hidden,), jnp.float32, -scale, scale)
        bhh = jax.random.uniform(next(kit), (4 * hidden,), jnp.float32, -scale, scale)
        lstm_params.append((wih, whh, bih, bhh))
        in_dim = hidden

    dims = [hidden] + list(mlp_layers) + [num_actions]
    fc_params = []
    for i in range(len(dims) - 1):
        s = 1.0 / (dims[i] ** 0.5)
        w = jax.random.uniform(next(kit), (dims[i + 1], dims[i]), jnp.float32, -s, s)
        b = jax.random.uniform(next(kit), (dims[i + 1],), jnp.float32, -s, s)
        fc_params.append((w, b))
    return lstm_params, fc_params


def drqn_forward(state, lstm_params, fc_params, hidden):
    T = state.shape[0]
    F = functools.reduce(lambda a, b: a * b, state.shape[1:])
    x = state.reshape(T, F).astype(jnp.float32)

    num_layers = len(lstm_params)
    num_fc = len(fc_params)
    A = fc_params[-1][0].shape[0]

    # ---- Host-side weight packing -------------------------------------------
    # Layer 0: pre-transposed wih/whh so the kernel does (·, in) @ (in, 4H);
    # merged bias (b_ih + b_hh) as a single (1, 4H) row.
    wih0, whh0, bih0, bhh0 = lstm_params[0]
    flat_inputs = [
        x,
        jnp.asarray(wih0.T, jnp.float32),                        # (F, 4H)
        jnp.asarray(whh0.T, jnp.float32),                        # (H, 4H)
        jnp.asarray((bih0 + bhh0).reshape(1, -1), jnp.float32),  # (1, 4H)
    ]
    # Stacked layers l >= 1: fuse input + recurrent matmuls by lane-concatenating
    # the weights on the host: (H, 8H) = [Wih^T | Whh^T]; merged bias (1, 4H).
    for (wih, whh, bih, bhh) in lstm_params[1:]:
        wcat = jnp.concatenate(
            [jnp.asarray(wih.T, jnp.float32), jnp.asarray(whh.T, jnp.float32)],
            axis=1)                                              # (H, 8H)
        flat_inputs.append(wcat)
        flat_inputs.append(jnp.asarray((bih + bhh).reshape(1, -1), jnp.float32))
    # FC weights: pre-transposed, biases as (1, out).
    for (w, b) in fc_params:
        flat_inputs.append(jnp.asarray(w.T, jnp.float32))
        flat_inputs.append(jnp.asarray(b.reshape(1, -1), jnp.float32))

    kernel = _make_drqn_kernel(num_layers, num_fc, hidden, T)
    vmem_spec = pl.BlockSpec(memory_space=pltpu.MemorySpace.VMEM)

    out = pl.pallas_call(
        kernel,
        out_shape=jax.ShapeDtypeStruct((T, A), jnp.float32),
        in_specs=[vmem_spec] * len(flat_inputs),
        out_specs=vmem_spec,
    )(*flat_inputs)
    return out.reshape(T, 1, A)  # match PyTorch output shape (T, 1, num_actions)


def drqn_ref(state, lstm_params, fc_params, hidden):
    """Pure-JAX reference mirroring torch.nn.LSTM + Sequential(Linear, ReLU, ...)."""
    T = state.shape[0]
    x = state.reshape(T, -1).astype(jnp.float32)
    num_layers = len(lstm_params)
    h = jnp.zeros((num_layers, 1, hidden), jnp.float32)
    c = jnp.zeros((num_layers, 1, hidden), jnp.float32)
    outs = []
    for t in range(T):
        inp = x[t:t + 1]
        for l, (wih, whh, bih, bhh) in enumerate(lstm_params):
            gates = inp @ wih.T + h[l] @ whh.T + bih + bhh
            i_g = jax.nn.sigmoid(gates[:, 0:hidden])
            f_g = jax.nn.sigmoid(gates[:, hidden:2 * hidden])
            g_g = jnp.tanh(gates[:, 2 * hidden:3 * hidden])
            o_g = jax.nn.sigmoid(gates[:, 3 * hidden:4 * hidden])
            c_new = f_g * c[l] + i_g * g_g
            h_new = o_g * jnp.tanh(c_new)
            h = h.at[l].set(h_new)
            c = c.at[l].set(c_new)
            inp = h_new
        y = inp
        for j, (w, b) in enumerate(fc_params):
            y = y @ w.T + b
            if j < len(fc_params) - 1:
                y = jnp.maximum(y, 0.0)
        outs.append(y)
    return jnp.stack(outs, axis=0)  # (T, 1, A)


if __name__ == "__main__":
    key = jax.random.PRNGKey(0)
    state_shape = [4, 16]        # flattened_state_size = 64
    num_actions = 16
    recurrent_layer_size = 32
    recurrent_layers_num = 2
    mlp_layers = [32, 32]
    B = 8                        # input batch dim -> LSTM sequence length

    kp, ks = jax.random.split(key)
    lstm_params, fc_params = init_params(
        kp, state_shape, num_actions, recurrent_layer_size,
        recurrent_layers_num, mlp_layers)
    state = jax.random.normal(ks, (B, *state_shape), jnp.float32)

    q = drqn_forward(state, lstm_params, fc_params, recurrent_layer_size)
    q = jax.block_until_ready(q)

    q_ref = drqn_ref(state, lstm_params, fc_params, recurrent_layer_size)
    assert q.shape == (B, 1, num_actions)
    assert jnp.allclose(q, q_ref, atol=1e-4, rtol=1e-4), "Pallas kernel mismatch vs reference"
    print("KERNEL_OK")
</pallas_src>

<mosaic_0001>
module attributes {stable_mosaic.version = 11 : i64} {
  func.func @kernel(%arg0: memref<8x64xf32, #tpu.memory_space<vmem>>, %arg1: memref<64x128xf32, #tpu.memory_space<vmem>>, %arg2: memref<32x128xf32, #tpu.memory_space<vmem>>, %arg3: memref<1x128xf32, #tpu.memory_space<vmem>>, %arg4: memref<32x256xf32, #tpu.memory_space<vmem>>, %arg5: memref<1x128xf32, #tpu.memory_space<vmem>>, %arg6: memref<32x32xf32, #tpu.memory_space<vmem>>, %arg7: memref<1x32xf32, #tpu.memory_space<vmem>>, %arg8: memref<32x32xf32, #tpu.memory_space<vmem>>, %arg9: memref<1x32xf32, #tpu.memory_space<vmem>>, %arg10: memref<32x16xf32, #tpu.memory_space<vmem>>, %arg11: memref<1x16xf32, #tpu.memory_space<vmem>>, %arg12: memref<8x16xf32, #tpu.memory_space<vmem>>) attributes {dimension_semantics = [], scalar_prefetch = 0 : i64, scratch_operands = 0 : i64, tpu.core_type = #tpu.core_type<tc>} {
    %c0 = arith.constant 0 : index
    %c0_0 = arith.constant 0 : index
    %0 = vector.load %arg0[%c0, %c0_0] : memref<8x64xf32, #tpu.memory_space<vmem>>, vector<8x64xf32>
    %c0_1 = arith.constant 0 : index
    %c0_2 = arith.constant 0 : index
    %1 = vector.load %arg1[%c0_1, %c0_2] : memref<64x128xf32, #tpu.memory_space<vmem>>, vector<64x128xf32>
    %c0_3 = arith.constant 0 : index
    %c0_4 = arith.constant 0 : index
    %2 = vector.load %arg2[%c0_3, %c0_4] : memref<32x128xf32, #tpu.memory_space<vmem>>, vector<32x128xf32>
    %c0_5 = arith.constant 0 : index
    %c0_6 = arith.constant 0 : index
    %3 = vector.load %arg3[%c0_5, %c0_6] : memref<1x128xf32, #tpu.memory_space<vmem>>, vector<1x128xf32>
    %c0_7 = arith.constant 0 : index
    %c0_8 = arith.constant 0 : index
    %4 = vector.load %arg4[%c0_7, %c0_8] : memref<32x256xf32, #tpu.memory_space<vmem>>, vector<32x256xf32>
    %c0_9 = arith.constant 0 : index
    %c0_10 = arith.constant 0 : index
    %5 = vector.load %arg5[%c0_9, %c0_10] : memref<1x128xf32, #tpu.memory_space<vmem>>, vector<1x128xf32>
    %cst = arith.constant dense<0.000000e+00> : vector<8x128xf32>
    %6 = tpu.matmul %0, %1, %cst {dimension_numbers = #tpu.dot_dimension_numbers<[1], [0], [0], [1], [0, 0, 1, 1], [], []>} : vector<8x64xf32>, vector<64x128xf32>, vector<8x128xf32> -> vector<8x128xf32>
    %7 = vector.broadcast %3 : vector<1x128xf32> to vector<8x128xf32>
    %8 = arith.addf %6, %7 : vector<8x128xf32>
    %cst_11 = arith.constant 0.000000e+00 : f32
    %9 = vector.broadcast %cst_11 : f32 to vector<1x32xf32>
    %cst_12 = arith.constant 0.000000e+00 : f32
    %10 = vector.broadcast %cst_12 : f32 to vector<1x32xf32>
    %cst_13 = arith.constant 0.000000e+00 : f32
    %11 = vector.broadcast %cst_13 : f32 to vector<1x32xf32>
    %cst_14 = arith.constant 0.000000e+00 : f32
    %12 = vector.broadcast %cst_14 : f32 to vector<1x32xf32>
    %13 = tpu.iota {dimensions = array<i32: 0>} : vector<2x1xi32>
    %c0_i32 = arith.constant 0 : i32
    %14 = vector.broadcast %c0_i32 : i32 to vector<2x1xi32>
    %15 = arith.cmpi eq, %13, %14 : vector<2x1xi32>
    %16 = tpu.iota {dimensions = array<i32: 0>} : vector<8x1xi32>
    %cst_15 = arith.constant 0.000000e+00 : f32
    %17 = vector.broadcast %cst_15 : f32 to vector<8x32xf32>
    %18 = vector.extract_strided_slice %8 {offsets = [0, 0], sizes = [1, 128], strides = [1, 1]} : vector<8x128xf32> to vector<1x128xf32>
    %cst_16 = arith.constant dense<0.000000e+00> : vector<1x128xf32>
    %19 = tpu.matmul %9, %2, %cst_16 {dimension_numbers = #tpu.dot_dimension_numbers<[1], [0], [0], [1], [0, 0, 1, 1], [], []>} : vector<1x32xf32>, vector<32x128xf32>, vector<1x128xf32> -> vector<1x128xf32>
    %20 = arith.addf %18, %19 : vector<1x128xf32>
    %21 = arith.negf %20 : vector<1x128xf32>
    %22 = math.exp %21 : vector<1x128xf32>
    %cst_17 = arith.constant 1.000000e+00 : f32
    %23 = vector.broadcast %cst_17 : f32 to vector<1x128xf32>
    %24 = arith.addf %23, %22 : vector<1x128xf32>
    %25 = arith.divf %23, %24 : vector<1x128xf32>
    %26 = math.tanh %20 : vector<1x128xf32>
    %27 = vector.extract_strided_slice %25 {offsets = [0, 0], sizes = [1, 32], strides = [1, 1]} : vector<1x128xf32> to vector<1x32xf32>
    %28 = vector.extract_strided_slice %25 {offsets = [0, 32], sizes = [1, 32], strides = [1, 1]} : vector<1x128xf32> to vector<1x32xf32>
    %29 = vector.extract_strided_slice %26 {offsets = [0, 64], sizes = [1, 32], strides = [1, 1]} : vector<1x128xf32> to vector<1x32xf32>
    %30 = vector.extract_strided_slice %25 {offsets = [0, 96], sizes = [1, 32], strides = [1, 1]} : vector<1x128xf32> to vector<1x32xf32>
    %31 = arith.mulf %28, %11 : vector<1x32xf32>
    %32 = arith.mulf %27, %29 : vector<1x32xf32>
    %33 = arith.addf %31, %32 : vector<1x32xf32>
    %34 = math.tanh %33 : vector<1x32xf32>
    %35 = arith.mulf %30, %34 : vector<1x32xf32>
    %36 = vector.shape_cast %15 : vector<2x1xi1> to vector<2x1xi1>
    %37 = vector.broadcast %36 : vector<2x1xi1> to vector<2x32xi1>
    %38 = vector.shape_cast %35 : vector<1x32xf32> to vector<1x32xf32>
    %39 = vector.broadcast %38 : vector<1x32xf32> to vector<2x32xf32>
    %40 = vector.shape_cast %10 : vector<1x32xf32> to vector<1x32xf32>
    %41 = vector.broadcast %40 : vector<1x32xf32> to vector<2x32xf32>
    %42 = arith.select %37, %39, %41 : vector<2x32xi1>, vector<2x32xf32>
    %cst_18 = arith.constant dense<0.000000e+00> : vector<2x256xf32>
    %43 = tpu.matmul %42, %4, %cst_18 {dimension_numbers = #tpu.dot_dimension_numbers<[1], [0], [0], [1], [0, 0, 1, 1], [], []>} : vector<2x32xf32>, vector<32x256xf32>, vector<2x256xf32> -> vector<2x256xf32>
    %44 = vector.extract_strided_slice %43 {offsets = [0, 0], sizes = [1, 128], strides = [1, 1]} : vector<2x256xf32> to vector<1x128xf32>
    %45 = vector.extract_strided_slice %43 {offsets = [1, 128], sizes = [1, 128], strides = [1, 1]} : vector<2x256xf32> to vector<1x128xf32>
    %46 = arith.addf %44, %45 : vector<1x128xf32>
    %47 = arith.addf %46, %5 : vector<1x128xf32>
    %48 = arith.negf %47 : vector<1x128xf32>
    %49 = math.exp %48 : vector<1x128xf32>
    %cst_19 = arith.constant 1.000000e+00 : f32
    %50 = vector.broadcast %cst_19 : f32 to vector<1x128xf32>
    %51 = arith.addf %50, %49 : vector<1x128xf32>
    %52 = arith.divf %50, %51 : vector<1x128xf32>
    %53 = math.tanh %47 : vector<1x128xf32>
    %54 = vector.extract_strided_slice %52 {offsets = [0, 0], sizes = [1, 32], strides = [1, 1]} : vector<1x128xf32> to vector<1x32xf32>
    %55 = vector.extract_strided_slice %52 {offsets = [0, 32], sizes = [1, 32], strides = [1, 1]} : vector<1x128xf32> to vector<1x32xf32>
    %56 = vector.extract_strided_slice %53 {offsets = [0, 64], sizes = [1, 32], strides = [1, 1]} : vector<1x128xf32> to vector<1x32xf32>
    %57 = vector.extract_strided_slice %52 {offsets = [0, 96], sizes = [1, 32], strides = [1, 1]} : vector<1x128xf32> to vector<1x32xf32>
    %58 = arith.mulf %55, %12 : vector<1x32xf32>
    %59 = arith.mulf %54, %56 : vector<1x32xf32>
    %60 = arith.addf %58, %59 : vector<1x32xf32>
    %61 = math.tanh %60 : vector<1x32xf32>
    %62 = arith.mulf %57, %61 : vector<1x32xf32>
    %c0_i32_20 = arith.constant 0 : i32
    %63 = vector.broadcast %c0_i32_20 : i32 to vector<8x1xi32>
    %64 = arith.cmpi eq, %16, %63 : vector<8x1xi32>
    %65 = vector.shape_cast %64 : vector<8x1xi1> to vector<8x1xi1>
    %66 = vector.broadcast %65 : vector<8x1xi1> to vector<8x32xi1>
    %67 = vector.shape_cast %62 : vector<1x32xf32> to vector<1x32xf32>
    %68 = vector.broadcast %67 : vector<1x32xf32> to vector<8x32xf32>
    %69 = arith.select %66, %68, %17 : vector<8x32xi1>, vector<8x32xf32>
    %70 = vector.extract_strided_slice %8 {offsets = [1, 0], sizes = [1, 128], strides = [1, 1]} : vector<8x128xf32> to vector<1x128xf32>
    %cst_21 = arith.constant dense<0.000000e+00> : vector<1x128xf32>
    %71 = tpu.matmul %35, %2, %cst_21 {dimension_numbers = #tpu.dot_dimension_numbers<[1], [0], [0], [1], [0, 0, 1, 1], [], []>} : vector<1x32xf32>, vector<32x128xf32>, vector<1x128xf32> -> vector<1x128xf32>
    %72 = arith.addf %70, %71 : vector<1x128xf32>
    %73 = arith.negf %72 : vector<1x128xf32>
    %74 = math.exp %73 : vector<1x128xf32>
    %cst_22 = arith.constant 1.000000e+00 : f32
    %75 = vector.broadcast %cst_22 : f32 to vector<1x128xf32>
    %76 = arith.addf %75, %74 : vector<1x128xf32>
    %77 = arith.divf %75, %76 : vector<1x128xf32>
    %78 = math.tanh %72 : vector<1x128xf32>
    %79 = vector.extract_strided_slice %77 {offsets = [0, 0], sizes = [1, 32], strides = [1, 1]} : vector<1x128xf32> to vector<1x32xf32>
    %80 = vector.extract_strided_slice %77 {offsets = [0, 32], sizes = [1, 32], strides = [1, 1]} : vector<1x128xf32> to vector<1x32xf32>
    %81 = vector.extract_strided_slice %78 {offsets = [0, 64], sizes = [1, 32], strides = [1, 1]} : vector<1x128xf32> to vector<1x32xf32>
    %82 = vector.extract_strided_slice %77 {offsets = [0, 96], sizes = [1, 32], strides = [1, 1]} : vector<1x128xf32> to vector<1x32xf32>
    %83 = arith.mulf %80, %33 : vector<1x32xf32>
    %84 = arith.mulf %79, %81 : vector<1x32xf32>
    %85 = arith.addf %83, %84 : vector<1x32xf32>
    %86 = math.tanh %85 : vector<1x32xf32>
    %87 = arith.mulf %82, %86 : vector<1x32xf32>
    %88 = vector.shape_cast %15 : vector<2x1xi1> to vector<2x1xi1>
    %89 = vector.broadcast %88 : vector<2x1xi1> to vector<2x32xi1>
    %90 = vector.shape_cast %87 : vector<1x32xf32> to vector<1x32xf32>
    %91 = vector.broadcast %90 : vector<1x32xf32> to vector<2x32xf32>
    %92 = vector.shape_cast %62 : vector<1x32xf32> to vector<1x32xf32>
    %93 = vector.broadcast %92 : vector<1x32xf32> to vector<2x32xf32>
    %94 = arith.select %89, %91, %93 : vector<2x32xi1>, vector<2x32xf32>
    %cst_23 = arith.constant dense<0.000000e+00> : vector<2x256xf32>
    %95 = tpu.matmul %94, %4, %cst_23 {dimension_numbers = #tpu.dot_dimension_numbers<[1], [0], [0], [1], [0, 0, 1, 1], [], []>} : vector<2x32xf32>, vector<32x256xf32>, vector<2x256xf32> -> vector<2x256xf32>
    %96 = vector.extract_strided_slice %95 {offsets = [0, 0], sizes = [1, 128], strides = [1, 1]} : vector<2x256xf32> to vector<1x128xf32>
    %97 = vector.extract_strided_slice %95 {offsets = [1, 128], sizes = [1, 128], strides = [1, 1]} : vector<2x256xf32> to vector<1x128xf32>
    %98 = arith.addf %96, %97 : vector<1x128xf32>
    %99 = arith.addf %98, %5 : vector<1x128xf32>
    %100 = arith.negf %99 : vector<1x128xf32>
    %101 = math.exp %100 : vector<1x128xf32>
    %cst_24 = arith.constant 1.000000e+00 : f32
    %102 = vector.broadcast %cst_24 : f32 to vector<1x128xf32>
    %103 = arith.addf %102, %101 : vector<1x128xf32>
    %104 = arith.divf %102, %103 : vector<1x128xf32>
    %105 = math.tanh %99 : vector<1x128xf32>
    %106 = vector.extract_strided_slice %104 {offsets = [0, 0], sizes = [1, 32], strides = [1, 1]} : vector<1x128xf32> to vector<1x32xf32>
    %107 = vector.extract_strided_slice %104 {offsets = [0, 32], sizes = [1, 32], strides = [1, 1]} : vector<1x128xf32> to vector<1x32xf32>
    %108 = vector.extract_strided_slice %105 {offsets = [0, 64], sizes = [1, 32], strides = [1, 1]} : vector<1x128xf32> to vector<1x32xf32>
    %109 = vector.extract_strided_slice %104 {offsets = [0, 96], sizes = [1, 32], strides = [1, 1]} : vector<1x128xf32> to vector<1x32xf32>
    %110 = arith.mulf %107, %60 : vector<1x32xf32>
    %111 = arith.mulf %106, %108 : vector<1x32xf32>
    %112 = arith.addf %110, %111 : vector<1x32xf32>
    %113 = math.tanh %112 : vector<1x32xf32>
    %114 = arith.mulf %109, %113 : vector<1x32xf32>
    %c1_i32 = arith.constant 1 : i32
    %115 = vector.broadcast %c1_i32 : i32 to vector<8x1xi32>
    %116 = arith.cmpi eq, %16, %115 : vector<8x1xi32>
    %117 = vector.shape_cast %116 : vector<8x1xi1> to vector<8x1xi1>
    %118 = vector.broadcast %117 : vector<8x1xi1> to vector<8x32xi1>
    %119 = vector.shape_cast %114 : vector<1x32xf32> to vector<1x32xf32>
    %120 = vector.broadcast %119 : vector<1x32xf32> to vector<8x32xf32>
    %121 = arith.select %118, %120, %69 : vector<8x32xi1>, vector<8x32xf32>
    %122 = vector.extract_strided_slice %8 {offsets = [2, 0], sizes = [1, 128], strides = [1, 1]} : vector<8x128xf32> to vector<1x128xf32>
    %cst_25 = arith.constant dense<0.000000e+00> : vector<1x128xf32>
    %123 = tpu.matmul %87, %2, %cst_25 {dimension_numbers = #tpu.dot_dimension_numbers<[1], [0], [0], [1], [0, 0, 1, 1], [], []>} : vector<1x32xf32>, vector<32x128xf32>, vector<1x128xf32> -> vector<1x128xf32>
    %124 = arith.addf %122, %123 : vector<1x128xf32>
    %125 = arith.negf %124 : vector<1x128xf32>
    %126 = math.exp %125 : vector<1x128xf32>
    %cst_26 = arith.constant 1.000000e+00 : f32
    %127 = vector.broadcast %cst_26 : f32 to vector<1x128xf32>
    %128 = arith.addf %127, %126 : vector<1x128xf32>
    %129 = arith.divf %127, %128 : vector<1x128xf32>
    %130 = math.tanh %124 : vector<1x128xf32>
    %131 = vector.extract_strided_slice %129 {offsets = [0, 0], sizes = [1, 32], strides = [1, 1]} : vector<1x128xf32> to vector<1x32xf32>
    %132 = vector.extract_strided_slice %129 {offsets = [0, 32], sizes = [1, 32], strides = [1, 1]} : vector<1x128xf32> to vector<1x32xf32>
    %133 = vector.extract_strided_slice %130 {offsets = [0, 64], sizes = [1, 32], strides = [1, 1]} : vector<1x128xf32> to vector<1x32xf32>
    %134 = vector.extract_strided_slice %129 {offsets = [0, 96], sizes = [1, 32], strides = [1, 1]} : vector<1x128xf32> to vector<1x32xf32>
    %135 = arith.mulf %132, %85 : vector<1x32xf32>
    %136 = arith.mulf %131, %133 : vector<1x32xf32>
    %137 = arith.addf %135, %136 : vector<1x32xf32>
    %138 = math.tanh %137 : vector<1x32xf32>
    %139 = arith.mulf %134, %138 : vector<1x32xf32>
    %140 = vector.shape_cast %15 : vector<2x1xi1> to vector<2x1xi1>
    %141 = vector.broadcast %140 : vector<2x1xi1> to vector<2x32xi1>
    %142 = vector.shape_cast %139 : vector<1x32xf32> to vector<1x32xf32>
    %143 = vector.broadcast %142 : vector<1x32xf32> to vector<2x32xf32>
    %144 = vector.shape_cast %114 : vector<1x32xf32> to vector<1x32xf32>
    %145 = vector.broadcast %144 : vector<1x32xf32> to vector<2x32xf32>
    %146 = arith.select %141, %143, %145 : vector<2x32xi1>, vector<2x32xf32>
    %cst_27 = arith.constant dense<0.000000e+00> : vector<2x256xf32>
    %147 = tpu.matmul %146, %4, %cst_27 {dimension_numbers = #tpu.dot_dimension_numbers<[1], [0], [0], [1], [0, 0, 1, 1], [], []>} : vector<2x32xf32>, vector<32x256xf32>, vector<2x256xf32> -> vector<2x256xf32>
    %148 = vector.extract_strided_slice %147 {offsets = [0, 0], sizes = [1, 128], strides = [1, 1]} : vector<2x256xf32> to vector<1x128xf32>
    %149 = vector.extract_strided_slice %147 {offsets = [1, 128], sizes = [1, 128], strides = [1, 1]} : vector<2x256xf32> to vector<1x128xf32>
    %150 = arith.addf %148, %149 : vector<1x128xf32>
    %151 = arith.addf %150, %5 : vector<1x128xf32>
    %152 = arith.negf %151 : vector<1x128xf32>
    %153 = math.exp %152 : vector<1x128xf32>
    %cst_28 = arith.constant 1.000000e+00 : f32
    %154 = vector.broadcast %cst_28 : f32 to vector<1x128xf32>
    %155 = arith.addf %154, %153 : vector<1x128xf32>
    %156 = arith.divf %154, %155 : vector<1x128xf32>
    %157 = math.tanh %151 : vector<1x128xf32>
    %158 = vector.extract_strided_slice %156 {offsets = [0, 0], sizes = [1, 32], strides = [1, 1]} : vector<1x128xf32> to vector<1x32xf32>
    %159 = vector.extract_strided_slice %156 {offsets = [0, 32], sizes = [1, 32], strides = [1, 1]} : vector<1x128xf32> to vector<1x32xf32>
    %160 = vector.extract_strided_slice %157 {offsets = [0, 64], sizes = [1, 32], strides = [1, 1]} : vector<1x128xf32> to vector<1x32xf32>
    %161 = vector.extract_strided_slice %156 {offsets = [0, 96], sizes = [1, 32], strides = [1, 1]} : vector<1x128xf32> to vector<1x32xf32>
    %162 = arith.mulf %159, %112 : vector<1x32xf32>
    %163 = arith.mulf %158, %160 : vector<1x32xf32>
    %164 = arith.addf %162, %163 : vector<1x32xf32>
    %165 = math.tanh %164 : vector<1x32xf32>
    %166 = arith.mulf %161, %165 : vector<1x32xf32>
    %c2_i32 = arith.constant 2 : i32
    %167 = vector.broadcast %c2_i32 : i32 to vector<8x1xi32>
    %168 = arith.cmpi eq, %16, %167 : vector<8x1xi32>
    %169 = vector.shape_cast %168 : vector<8x1xi1> to vector<8x1xi1>
    %170 = vector.broadcast %169 : vector<8x1xi1> to vector<8x32xi1>
    %171 = vector.shape_cast %166 : vector<1x32xf32> to vector<1x32xf32>
    %172 = vector.broadcast %171 : vector<1x32xf32> to vector<8x32xf32>
    %173 = arith.select %170, %172, %121 : vector<8x32xi1>, vector<8x32xf32>
    %174 = vector.extract_strided_slice %8 {offsets = [3, 0], sizes = [1, 128], strides = [1, 1]} : vector<8x128xf32> to vector<1x128xf32>
    %cst_29 = arith.constant dense<0.000000e+00> : vector<1x128xf32>
    %175 = tpu.matmul %139, %2, %cst_29 {dimension_numbers = #tpu.dot_dimension_numbers<[1], [0], [0], [1], [0, 0, 1, 1], [], []>} : vector<1x32xf32>, vector<32x128xf32>, vector<1x128xf32> -> vector<1x128xf32>
    %176 = arith.addf %174, %175 : vector<1x128xf32>
    %177 = arith.negf %176 : vector<1x128xf32>
    %178 = math.exp %177 : vector<1x128xf32>
    %cst_30 = arith.constant 1.000000e+00 : f32
    %179 = vector.broadcast %cst_30 : f32 to vector<1x128xf32>
    %180 = arith.addf %179, %178 : vector<1x128xf32>
    %181 = arith.divf %179, %180 : vector<1x128xf32>
    %182 = math.tanh %176 : vector<1x128xf32>
    %183 = vector.extract_strided_slice %181 {offsets = [0, 0], sizes = [1, 32], strides = [1, 1]} : vector<1x128xf32> to vector<1x32xf32>
    %184 = vector.extract_strided_slice %181 {offsets = [0, 32], sizes = [1, 32], strides = [1, 1]} : vector<1x128xf32> to vector<1x32xf32>
    %185 = vector.extract_strided_slice %182 {offsets = [0, 64], sizes = [1, 32], strides = [1, 1]} : vector<1x128xf32> to vector<1x32xf32>
    %186 = vector.extract_strided_slice %181 {offsets = [0, 96], sizes = [1, 32], strides = [1, 1]} : vector<1x128xf32> to vector<1x32xf32>
    %187 = arith.mulf %184, %137 : vector<1x32xf32>
    %188 = arith.mulf %183, %185 : vector<1x32xf32>
    %189 = arith.addf %187, %188 : vector<1x32xf32>
    %190 = math.tanh %189 : vector<1x32xf32>
    %191 = arith.mulf %186, %190 : vector<1x32xf32>
    %192 = vector.shape_cast %15 : vector<2x1xi1> to vector<2x1xi1>
    %193 = vector.broadcast %192 : vector<2x1xi1> to vector<2x32xi1>
    %194 = vector.shape_cast %191 : vector<1x32xf32> to vector<1x32xf32>
    %195 = vector.broadcast %194 : vector<1x32xf32> to vector<2x32xf32>
    %196 = vector.shape_cast %166 : vector<1x32xf32> to vector<1x32xf32>
    %197 = vector.broadcast %196 : vector<1x32xf32> to vector<2x32xf32>
    %198 = arith.select %193, %195, %197 : vector<2x32xi1>, vector<2x32xf32>
    %cst_31 = arith.constant dense<0.000000e+00> : vector<2x256xf32>
    %199 = tpu.matmul %198, %4, %cst_31 {dimension_numbers = #tpu.dot_dimension_numbers<[1], [0], [0], [1], [0, 0, 1, 1], [], []>} : vector<2x32xf32>, vector<32x256xf32>, vector<2x256xf32> -> vector<2x256xf32>
    %200 = vector.extract_strided_slice %199 {offsets = [0, 0], sizes = [1, 128], strides = [1, 1]} : vector<2x256xf32> to vector<1x128xf32>
    %201 = vector.extract_strided_slice %199 {offsets = [1, 128], sizes = [1, 128], strides = [1, 1]} : vector<2x256xf32> to vector<1x128xf32>
    %202 = arith.addf %200, %201 : vector<1x128xf32>
    %203 = arith.addf %202, %5 : vector<1x128xf32>
    %204 = arith.negf %203 : vector<1x128xf32>
    %205 = math.exp %204 : vector<1x128xf32>
    %cst_32 = arith.constant 1.000000e+00 : f32
    %206 = vector.broadcast %cst_32 : f32 to vector<1x128xf32>
    %207 = arith.addf %206, %205 : vector<1x128xf32>
    %208 = arith.divf %206, %207 : vector<1x128xf32>
    %209 = math.tanh %203 : vector<1x128xf32>
    %210 = vector.extract_strided_slice %208 {offsets = [0, 0], sizes = [1, 32], strides = [1, 1]} : vector<1x128xf32> to vector<1x32xf32>
    %211 = vector.extract_strided_slice %208 {offsets = [0, 32], sizes = [1, 32], strides = [1, 1]} : vector<1x128xf32> to vector<1x32xf32>
    %212 = vector.extract_strided_slice %209 {offsets = [0, 64], sizes = [1, 32], strides = [1, 1]} : vector<1x128xf32> to vector<1x32xf32>
    %213 = vector.extract_strided_slice %208 {offsets = [0, 96], sizes = [1, 32], strides = [1, 1]} : vector<1x128xf32> to vector<1x32xf32>
    %214 = arith.mulf %211, %164 : vector<1x32xf32>
    %215 = arith.mulf %210, %212 : vector<1x32xf32>
    %216 = arith.addf %214, %215 : vector<1x32xf32>
    %217 = math.tanh %216 : vector<1x32xf32>
    %218 = arith.mulf %213, %217 : vector<1x32xf32>
    %c3_i32 = arith.constant 3 : i32
    %219 = vector.broadcast %c3_i32 : i32 to vector<8x1xi32>
    %220 = arith.cmpi eq, %16, %219 : vector<8x1xi32>
    %221 = vector.shape_cast %220 : vector<8x1xi1> to vector<8x1xi1>
    %222 = vector.broadcast %221 : vector<8x1xi1> to vector<8x32xi1>
    %223 = vector.shape_cast %218 : vector<1x32xf32> to vector<1x32xf32>
    %224 = vector.broadcast %223 : vector<1x32xf32> to vector<8x32xf32>
    %225 = arith.select %222, %224, %173 : vector<8x32xi1>, vector<8x32xf32>
    %226 = vector.extract_strided_slice %8 {offsets = [4, 0], sizes = [1, 128], strides = [1, 1]} : vector<8x128xf32> to vector<1x128xf32>
    %cst_33 = arith.constant dense<0.000000e+00> : vector<1x128xf32>
    %227 = tpu.matmul %191, %2, %cst_33 {dimension_numbers = #tpu.dot_dimension_numbers<[1], [0], [0], [1], [0, 0, 1, 1], [], []>} : vector<1x32xf32>, vector<32x128xf32>, vector<1x128xf32> -> vector<1x128xf32>
    %228 = arith.addf %226, %227 : vector<1x128xf32>
    %229 = arith.negf %228 : vector<1x128xf32>
    %230 = math.exp %229 : vector<1x128xf32>
    %cst_34 = arith.constant 1.000000e+00 : f32
    %231 = vector.broadcast %cst_34 : f32 to vector<1x128xf32>
    %232 = arith.addf %231, %230 : vector<1x128xf32>
    %233 = arith.divf %231, %232 : vector<1x128xf32>
    %234 = math.tanh %228 : vector<1x128xf32>
    %235 = vector.extract_strided_slice %233 {offsets = [0, 0], sizes = [1, 32], strides = [1, 1]} : vector<1x128xf32> to vector<1x32xf32>
    %236 = vector.extract_strided_slice %233 {offsets = [0, 32], sizes = [1, 32], strides = [1, 1]} : vector<1x128xf32> to vector<1x32xf32>
    %237 = vector.extract_strided_slice %234 {offsets = [0, 64], sizes = [1, 32], strides = [1, 1]} : vector<1x128xf32> to vector<1x32xf32>
    %238 = vector.extract_strided_slice %233 {offsets = [0, 96], sizes = [1, 32], strides = [1, 1]} : vector<1x128xf32> to vector<1x32xf32>
    %239 = arith.mulf %236, %189 : vector<1x32xf32>
    %240 = arith.mulf %235, %237 : vector<1x32xf32>
    %241 = arith.addf %239, %240 : vector<1x32xf32>
    %242 = math.tanh %241 : vector<1x32xf32>
    %243 = arith.mulf %238, %242 : vector<1x32xf32>
    %244 = vector.shape_cast %15 : vector<2x1xi1> to vector<2x1xi1>
    %245 = vector.broadcast %244 : vector<2x1xi1> to vector<2x32xi1>
    %246 = vector.shape_cast %243 : vector<1x32xf32> to vector<1x32xf32>
    %247 = vector.broadcast %246 : vector<1x32xf32> to vector<2x32xf32>
    %248 = vector.shape_cast %218 : vector<1x32xf32> to vector<1x32xf32>
    %249 = vector.broadcast %248 : vector<1x32xf32> to vector<2x32xf32>
    %250 = arith.select %245, %247, %249 : vector<2x32xi1>, vector<2x32xf32>
    %cst_35 = arith.constant dense<0.000000e+00> : vector<2x256xf32>
    %251 = tpu.matmul %250, %4, %cst_35 {dimension_numbers = #tpu.dot_dimension_numbers<[1], [0], [0], [1], [0, 0, 1, 1], [], []>} : vector<2x32xf32>, vector<32x256xf32>, vector<2x256xf32> -> vector<2x256xf32>
    %252 = vector.extract_strided_slice %251 {offsets = [0, 0], sizes = [1, 128], strides = [1, 1]} : vector<2x256xf32> to vector<1x128xf32>
    %253 = vector.extract_strided_slice %251 {offsets = [1, 128], sizes = [1, 128], strides = [1, 1]} : vector<2x256xf32> to vector<1x128xf32>
    %254 = arith.addf %252, %253 : vector<1x128xf32>
    %255 = arith.addf %254, %5 : vector<1x128xf32>
    %256 = arith.negf %255 : vector<1x128xf32>
    %257 = math.exp %256 : vector<1x128xf32>
    %cst_36 = arith.constant 1.000000e+00 : f32
    %258 = vector.broadcast %cst_36 : f32 to vector<1x128xf32>
    %259 = arith.addf %258, %257 : vector<1x128xf32>
    %260 = arith.divf %258, %259 : vector<1x128xf32>
    %261 = math.tanh %255 : vector<1x128xf32>
    %262 = vector.extract_strided_slice %260 {offsets = [0, 0], sizes = [1, 32], strides = [1, 1]} : vector<1x128xf32> to vector<1x32xf32>
    %263 = vector.extract_strided_slice %260 {offsets = [0, 32], sizes = [1, 32], strides = [1, 1]} : vector<1x128xf32> to vector<1x32xf32>
    %264 = vector.extract_strided_slice %261 {offsets = [0, 64], sizes = [1, 32], strides = [1, 1]} : vector<1x128xf32> to vector<1x32xf32>
    %265 = vector.extract_strided_slice %260 {offsets = [0, 96], sizes = [1, 32], strides = [1, 1]} : vector<1x128xf32> to vector<1x32xf32>
    %266 = arith.mulf %263, %216 : vector<1x32xf32>
    %267 = arith.mulf %262, %264 : vector<1x32xf32>
    %268 = arith.addf %266, %267 : vector<1x32xf32>
    %269 = math.tanh %268 : vector<1x32xf32>
    %270 = arith.mulf %265, %269 : vector<1x32xf32>
    %c4_i32 = arith.constant 4 : i32
    %271 = vector.broadcast %c4_i32 : i32 to vector<8x1xi32>
    %272 = arith.cmpi eq, %16, %271 : vector<8x1xi32>
    %273 = vector.shape_cast %272 : vector<8x1xi1> to vector<8x1xi1>
    %274 = vector.broadcast %273 : vector<8x1xi1> to vector<8x32xi1>
    %275 = vector.shape_cast %270 : vector<1x32xf32> to vector<1x32xf32>
    %276 = vector.broadcast %275 : vector<1x32xf32> to vector<8x32xf32>
    %277 = arith.select %274, %276, %225 : vector<8x32xi1>, vector<8x32xf32>
    %278 = vector.extract_strided_slice %8 {offsets = [5, 0], sizes = [1, 128], strides = [1, 1]} : vector<8x128xf32> to vector<1x128xf32>
    %cst_37 = arith.constant dense<0.000000e+00> : vector<1x128xf32>
    %279 = tpu.matmul %243, %2, %cst_37 {dimension_numbers = #tpu.dot_dimension_numbers<[1], [0], [0], [1], [0, 0, 1, 1], [], []>} : vector<1x32xf32>, vector<32x128xf32>, vector<1x128xf32> -> vector<1x128xf32>
    %280 = arith.addf %278, %279 : vector<1x128xf32>
    %281 = arith.negf %280 : vector<1x128xf32>
    %282 = math.exp %281 : vector<1x128xf32>
    %cst_38 = arith.constant 1.000000e+00 : f32
    %283 = vector.broadcast %cst_38 : f32 to vector<1x128xf32>
    %284 = arith.addf %283, %282 : vector<1x128xf32>
    %285 = arith.divf %283, %284 : vector<1x128xf32>
    %286 = math.tanh %280 : vector<1x128xf32>
    %287 = vector.extract_strided_slice %285 {offsets = [0, 0], sizes = [1, 32], strides = [1, 1]} : vector<1x128xf32> to vector<1x32xf32>
    %288 = vector.extract_strided_slice %285 {offsets = [0, 32], sizes = [1, 32], strides = [1, 1]} : vector<1x128xf32> to vector<1x32xf32>
    %289 = vector.extract_strided_slice %286 {offsets = [0, 64], sizes = [1, 32], strides = [1, 1]} : vector<1x128xf32> to vector<1x32xf32>
    %290 = vector.extract_strided_slice %285 {offsets = [0, 96], sizes = [1, 32], strides = [1, 1]} : vector<1x128xf32> to vector<1x32xf32>
    %291 = arith.mulf %288, %241 : vector<1x32xf32>
    %292 = arith.mulf %287, %289 : vector<1x32xf32>
    %293 = arith.addf %291, %292 : vector<1x32xf32>
    %294 = math.tanh %293 : vector<1x32xf32>
    %295 = arith.mulf %290, %294 : vector<1x32xf32>
    %296 = vector.shape_cast %15 : vector<2x1xi1> to vector<2x1xi1>
    %297 = vector.broadcast %296 : vector<2x1xi1> to vector<2x32xi1>
    %298 = vector.shape_cast %295 : vector<1x32xf32> to vector<1x32xf32>
    %299 = vector.broadcast %298 : vector<1x32xf32> to vector<2x32xf32>
    %300 = vector.shape_cast %270 : vector<1x32xf32> to vector<1x32xf32>
    %301 = vector.broadcast %300 : vector<1x32xf32> to vector<2x32xf32>
    %302 = arith.select %297, %299, %301 : vector<2x32xi1>, vector<2x32xf32>
    %cst_39 = arith.constant dense<0.000000e+00> : vector<2x256xf32>
    %303 = tpu.matmul %302, %4, %cst_39 {dimension_numbers = #tpu.dot_dimension_numbers<[1], [0], [0], [1], [0, 0, 1, 1], [], []>} : vector<2x32xf32>, vector<32x256xf32>, vector<2x256xf32> -> vector<2x256xf32>
    %304 = vector.extract_strided_slice %303 {offsets = [0, 0], sizes = [1, 128], strides = [1, 1]} : vector<2x256xf32> to vector<1x128xf32>
    %305 = vector.extract_strided_slice %303 {offsets = [1, 128], sizes = [1, 128], strides = [1, 1]} : vector<2x256xf32> to vector<1x128xf32>
    %306 = arith.addf %304, %305 : vector<1x128xf32>
    %307 = arith.addf %306, %5 : vector<1x128xf32>
    %308 = arith.negf %307 : vector<1x128xf32>
    %309 = math.exp %308 : vector<1x128xf32>
    %cst_40 = arith.constant 1.000000e+00 : f32
    %310 = vector.broadcast %cst_40 : f32 to vector<1x128xf32>
    %311 = arith.addf %310, %309 : vector<1x128xf32>
    %312 = arith.divf %310, %311 : vector<1x128xf32>
    %313 = math.tanh %307 : vector<1x128xf32>
    %314 = vector.extract_strided_slice %312 {offsets = [0, 0], sizes = [1, 32], strides = [1, 1]} : vector<1x128xf32> to vector<1x32xf32>
    %315 = vector.extract_strided_slice %312 {offsets = [0, 32], sizes = [1, 32], strides = [1, 1]} : vector<1x128xf32> to vector<1x32xf32>
    %316 = vector.extract_strided_slice %313 {offsets = [0, 64], sizes = [1, 32], strides = [1, 1]} : vector<1x128xf32> to vector<1x32xf32>
    %317 = vector.extract_strided_slice %312 {offsets = [0, 96], sizes = [1, 32], strides = [1, 1]} : vector<1x128xf32> to vector<1x32xf32>
    %318 = arith.mulf %315, %268 : vector<1x32xf32>
    %319 = arith.mulf %314, %316 : vector<1x32xf32>
    %320 = arith.addf %318, %319 : vector<1x32xf32>
    %321 = math.tanh %320 : vector<1x32xf32>
    %322 = arith.mulf %317, %321 : vector<1x32xf32>
    %c5_i32 = arith.constant 5 : i32
    %323 = vector.broadcast %c5_i32 : i32 to vector<8x1xi32>
    %324 = arith.cmpi eq, %16, %323 : vector<8x1xi32>
    %325 = vector.shape_cast %324 : vector<8x1xi1> to vector<8x1xi1>
    %326 = vector.broadcast %325 : vector<8x1xi1> to vector<8x32xi1>
    %327 = vector.shape_cast %322 : vector<1x32xf32> to vector<1x32xf32>
    %328 = vector.broadcast %327 : vector<1x32xf32> to vector<8x32xf32>
    %329 = arith.select %326, %328, %277 : vector<8x32xi1>, vector<8x32xf32>
    %330 = vector.extract_strided_slice %8 {offsets = [6, 0], sizes = [1, 128], strides = [1, 1]} : vector<8x128xf32> to vector<1x128xf32>
    %cst_41 = arith.constant dense<0.000000e+00> : vector<1x128xf32>
    %331 = tpu.matmul %295, %2, %cst_41 {dimension_numbers = #tpu.dot_dimension_numbers<[1], [0], [0], [1], [0, 0, 1, 1], [], []>} : vector<1x32xf32>, vector<32x128xf32>, vector<1x128xf32> -> vector<1x128xf32>
    %332 = arith.addf %330, %331 : vector<1x128xf32>
    %333 = arith.negf %332 : vector<1x128xf32>
    %334 = math.exp %333 : vector<1x128xf32>
    %cst_42 = arith.constant 1.000000e+00 : f32
    %335 = vector.broadcast %cst_42 : f32 to vector<1x128xf32>
    %336 = arith.addf %335, %334 : vector<1x128xf32>
    %337 = arith.divf %335, %336 : vector<1x128xf32>
    %338 = math.tanh %332 : vector<1x128xf32>
    %339 = vector.extract_strided_slice %337 {offsets = [0, 0], sizes = [1, 32], strides = [1, 1]} : vector<1x128xf32> to vector<1x32xf32>
    %340 = vector.extract_strided_slice %337 {offsets = [0, 32], sizes = [1, 32], strides = [1, 1]} : vector<1x128xf32> to vector<1x32xf32>
    %341 = vector.extract_strided_slice %338 {offsets = [0, 64], sizes = [1, 32], strides = [1, 1]} : vector<1x128xf32> to vector<1x32xf32>
    %342 = vector.extract_strided_slice %337 {offsets = [0, 96], sizes = [1, 32], strides = [1, 1]} : vector<1x128xf32> to vector<1x32xf32>
    %343 = arith.mulf %340, %293 : vector<1x32xf32>
    %344 = arith.mulf %339, %341 : vector<1x32xf32>
    %345 = arith.addf %343, %344 : vector<1x32xf32>
    %346 = math.tanh %345 : vector<1x32xf32>
    %347 = arith.mulf %342, %346 : vector<1x32xf32>
    %348 = vector.shape_cast %15 : vector<2x1xi1> to vector<2x1xi1>
    %349 = vector.broadcast %348 : vector<2x1xi1> to vector<2x32xi1>
    %350 = vector.shape_cast %347 : vector<1x32xf32> to vector<1x32xf32>
    %351 = vector.broadcast %350 : vector<1x32xf32> to vector<2x32xf32>
    %352 = vector.shape_cast %322 : vector<1x32xf32> to vector<1x32xf32>
    %353 = vector.broadcast %352 : vector<1x32xf32> to vector<2x32xf32>
    %354 = arith.select %349, %351, %353 : vector<2x32xi1>, vector<2x32xf32>
    %cst_43 = arith.constant dense<0.000000e+00> : vector<2x256xf32>
    %355 = tpu.matmul %354, %4, %cst_43 {dimension_numbers = #tpu.dot_dimension_numbers<[1], [0], [0], [1], [0, 0, 1, 1], [], []>} : vector<2x32xf32>, vector<32x256xf32>, vector<2x256xf32> -> vector<2x256xf32>
    %356 = vector.extract_strided_slice %355 {offsets = [0, 0], sizes = [1, 128], strides = [1, 1]} : vector<2x256xf32> to vector<1x128xf32>
    %357 = vector.extract_strided_slice %355 {offsets = [1, 128], sizes = [1, 128], strides = [1, 1]} : vector<2x256xf32> to vector<1x128xf32>
    %358 = arith.addf %356, %357 : vector<1x128xf32>
    %359 = arith.addf %358, %5 : vector<1x128xf32>
    %360 = arith.negf %359 : vector<1x128xf32>
    %361 = math.exp %360 : vector<1x128xf32>
    %cst_44 = arith.constant 1.000000e+00 : f32
    %362 = vector.broadcast %cst_44 : f32 to vector<1x128xf32>
    %363 = arith.addf %362, %361 : vector<1x128xf32>
    %364 = arith.divf %362, %363 : vector<1x128xf32>
    %365 = math.tanh %359 : vector<1x128xf32>
    %366 = vector.extract_strided_slice %364 {offsets = [0, 0], sizes = [1, 32], strides = [1, 1]} : vector<1x128xf32> to vector<1x32xf32>
    %367 = vector.extract_strided_slice %364 {offsets = [0, 32], sizes = [1, 32], strides = [1, 1]} : vector<1x128xf32> to vector<1x32xf32>
    %368 = vector.extract_strided_slice %365 {offsets = [0, 64], sizes = [1, 32], strides = [1, 1]} : vector<1x128xf32> to vector<1x32xf32>
    %369 = vector.extract_strided_slice %364 {offsets = [0, 96], sizes = [1, 32], strides = [1, 1]} : vector<1x128xf32> to vector<1x32xf32>
    %370 = arith.mulf %367, %320 : vector<1x32xf32>
    %371 = arith.mulf %366, %368 : vector<1x32xf32>
    %372 = arith.addf %370, %371 : vector<1x32xf32>
    %373 = math.tanh %372 : vector<1x32xf32>
    %374 = arith.mulf %369, %373 : vector<1x32xf32>
    %c6_i32 = arith.constant 6 : i32
    %375 = vector.broadcast %c6_i32 : i32 to vector<8x1xi32>
    %376 = arith.cmpi eq, %16, %375 : vector<8x1xi32>
    %377 = vector.shape_cast %376 : vector<8x1xi1> to vector<8x1xi1>
    %378 = vector.broadcast %377 : vector<8x1xi1> to vector<8x32xi1>
    %379 = vector.shape_cast %374 : vector<1x32xf32> to vector<1x32xf32>
    %380 = vector.broadcast %379 : vector<1x32xf32> to vector<8x32xf32>
    %381 = arith.select %378, %380, %329 : vector<8x32xi1>, vector<8x32xf32>
    %382 = vector.extract_strided_slice %8 {offsets = [7, 0], sizes = [1, 128], strides = [1, 1]} : vector<8x128xf32> to vector<1x128xf32>
    %cst_45 = arith.constant dense<0.000000e+00> : vector<1x128xf32>
    %383 = tpu.matmul %347, %2, %cst_45 {dimension_numbers = #tpu.dot_dimension_numbers<[1], [0], [0], [1], [0, 0, 1, 1], [], []>} : vector<1x32xf32>, vector<32x128xf32>, vector<1x128xf32> -> vector<1x128xf32>
    %384 = arith.addf %382, %383 : vector<1x128xf32>
    %385 = arith.negf %384 : vector<1x128xf32>
    %386 = math.exp %385 : vector<1x128xf32>
    %cst_46 = arith.constant 1.000000e+00 : f32
    %387 = vector.broadcast %cst_46 : f32 to vector<1x128xf32>
    %388 = arith.addf %387, %386 : vector<1x128xf32>
    %389 = arith.divf %387, %388 : vector<1x128xf32>
    %390 = math.tanh %384 : vector<1x128xf32>
    %391 = vector.extract_strided_slice %389 {offsets = [0, 0], sizes = [1, 32], strides = [1, 1]} : vector<1x128xf32> to vector<1x32xf32>
    %392 = vector.extract_strided_slice %389 {offsets = [0, 32], sizes = [1, 32], strides = [1, 1]} : vector<1x128xf32> to vector<1x32xf32>
    %393 = vector.extract_strided_slice %390 {offsets = [0, 64], sizes = [1, 32], strides = [1, 1]} : vector<1x128xf32> to vector<1x32xf32>
    %394 = vector.extract_strided_slice %389 {offsets = [0, 96], sizes = [1, 32], strides = [1, 1]} : vector<1x128xf32> to vector<1x32xf32>
    %395 = arith.mulf %392, %345 : vector<1x32xf32>
    %396 = arith.mulf %391, %393 : vector<1x32xf32>
    %397 = arith.addf %395, %396 : vector<1x32xf32>
    %398 = math.tanh %397 : vector<1x32xf32>
    %399 = arith.mulf %394, %398 : vector<1x32xf32>
    %400 = vector.shape_cast %15 : vector<2x1xi1> to vector<2x1xi1>
    %401 = vector.broadcast %400 : vector<2x1xi1> to vector<2x32xi1>
    %402 = vector.shape_cast %399 : vector<1x32xf32> to vector<1x32xf32>
    %403 = vector.broadcast %402 : vector<1x32xf32> to vector<2x32xf32>
    %404 = vector.shape_cast %374 : vector<1x32xf32> to vector<1x32xf32>
    %405 = vector.broadcast %404 : vector<1x32xf32> to vector<2x32xf32>
    %406 = arith.select %401, %403, %405 : vector<2x32xi1>, vector<2x32xf32>
    %cst_47 = arith.constant dense<0.000000e+00> : vector<2x256xf32>
    %407 = tpu.matmul %406, %4, %cst_47 {dimension_numbers = #tpu.dot_dimension_numbers<[1], [0], [0], [1], [0, 0, 1, 1], [], []>} : vector<2x32xf32>, vector<32x256xf32>, vector<2x256xf32> -> vector<2x256xf32>
    %408 = vector.extract_strided_slice %407 {offsets = [0, 0], sizes = [1, 128], strides = [1, 1]} : vector<2x256xf32> to vector<1x128xf32>
    %409 = vector.extract_strided_slice %407 {offsets = [1, 128], sizes = [1, 128], strides = [1, 1]} : vector<2x256xf32> to vector<1x128xf32>
    %410 = arith.addf %408, %409 : vector<1x128xf32>
    %411 = arith.addf %410, %5 : vector<1x128xf32>
    %412 = arith.negf %411 : vector<1x128xf32>
    %413 = math.exp %412 : vector<1x128xf32>
    %cst_48 = arith.constant 1.000000e+00 : f32
    %414 = vector.broadcast %cst_48 : f32 to vector<1x128xf32>
    %415 = arith.addf %414, %413 : vector<1x128xf32>
    %416 = arith.divf %414, %415 : vector<1x128xf32>
    %417 = math.tanh %411 : vector<1x128xf32>
    %418 = vector.extract_strided_slice %416 {offsets = [0, 0], sizes = [1, 32], strides = [1, 1]} : vector<1x128xf32> to vector<1x32xf32>
    %419 = vector.extract_strided_slice %416 {offsets = [0, 32], sizes = [1, 32], strides = [1, 1]} : vector<1x128xf32> to vector<1x32xf32>
    %420 = vector.extract_strided_slice %417 {offsets = [0, 64], sizes = [1, 32], strides = [1, 1]} : vector<1x128xf32> to vector<1x32xf32>
    %421 = vector.extract_strided_slice %416 {offsets = [0, 96], sizes = [1, 32], strides = [1, 1]} : vector<1x128xf32> to vector<1x32xf32>
    %422 = arith.mulf %419, %372 : vector<1x32xf32>
    %423 = arith.mulf %418, %420 : vector<1x32xf32>
    %424 = arith.addf %422, %423 : vector<1x32xf32>
    %425 = math.tanh %424 : vector<1x32xf32>
    %426 = arith.mulf %421, %425 : vector<1x32xf32>
    %c7_i32 = arith.constant 7 : i32
    %427 = vector.broadcast %c7_i32 : i32 to vector<8x1xi32>
    %428 = arith.cmpi eq, %16, %427 : vector<8x1xi32>
    %429 = vector.shape_cast %428 : vector<8x1xi1> to vector<8x1xi1>
    %430 = vector.broadcast %429 : vector<8x1xi1> to vector<8x32xi1>
    %431 = vector.shape_cast %426 : vector<1x32xf32> to vector<1x32xf32>
    %432 = vector.broadcast %431 : vector<1x32xf32> to vector<8x32xf32>
    %433 = arith.select %430, %432, %381 : vector<8x32xi1>, vector<8x32xf32>
    %c0_49 = arith.constant 0 : index
    %c0_50 = arith.constant 0 : index
    %434 = vector.load %arg6[%c0_49, %c0_50] : memref<32x32xf32, #tpu.memory_space<vmem>>, vector<32x32xf32>
    %c0_51 = arith.constant 0 : index
    %c0_52 = arith.constant 0 : index
    %435 = vector.load %arg7[%c0_51, %c0_52] : memref<1x32xf32, #tpu.memory_space<vmem>>, vector<1x32xf32>
    %cst_53 = arith.constant dense<0.000000e+00> : vector<8x32xf32>
    %436 = tpu.matmul %433, %434, %cst_53 {dimension_numbers = #tpu.dot_dimension_numbers<[1], [0], [0], [1], [0, 0, 1, 1], [], []>} : vector<8x32xf32>, vector<32x32xf32>, vector<8x32xf32> -> vector<8x32xf32>
    %437 = vector.broadcast %435 : vector<1x32xf32> to vector<8x32xf32>
    %438 = arith.addf %436, %437 : vector<8x32xf32>
    %cst_54 = arith.constant 0.000000e+00 : f32
    %439 = vector.broadcast %cst_54 : f32 to vector<8x32xf32>
    %440 = arith.maximumf %438, %439 : vector<8x32xf32>
    %c0_55 = arith.constant 0 : index
    %c0_56 = arith.constant 0 : index
    %441 = vector.load %arg8[%c0_55, %c0_56] : memref<32x32xf32, #tpu.memory_space<vmem>>, vector<32x32xf32>
    %c0_57 = arith.constant 0 : index
    %c0_58 = arith.constant 0 : index
    %442 = vector.load %arg9[%c0_57, %c0_58] : memref<1x32xf32, #tpu.memory_space<vmem>>, vector<1x32xf32>
    %cst_59 = arith.constant dense<0.000000e+00> : vector<8x32xf32>
    %443 = tpu.matmul %440, %441, %cst_59 {dimension_numbers = #tpu.dot_dimension_numbers<[1], [0], [0], [1], [0, 0, 1, 1], [], []>} : vector<8x32xf32>, vector<32x32xf32>, vector<8x32xf32> -> vector<8x32xf32>
    %444 = vector.broadcast %442 : vector<1x32xf32> to vector<8x32xf32>
    %445 = arith.addf %443, %444 : vector<8x32xf32>
    %cst_60 = arith.constant 0.000000e+00 : f32
    %446 = vector.broadcast %cst_60 : f32 to vector<8x32xf32>
    %447 = arith.maximumf %445, %446 : vector<8x32xf32>
    %c0_61 = arith.constant 0 : index
    %c0_62 = arith.constant 0 : index
    %448 = vector.load %arg10[%c0_61, %c0_62] : memref<32x16xf32, #tpu.memory_space<vmem>>, vector<32x16xf32>
    %c0_63 = arith.constant 0 : index
    %c0_64 = arith.constant 0 : index
    %449 = vector.load %arg11[%c0_63, %c0_64] : memref<1x16xf32, #tpu.memory_space<vmem>>, vector<1x16xf32>
    %cst_65 = arith.constant dense<0.000000e+00> : vector<8x16xf32>
    %450 = tpu.matmul %447, %448, %cst_65 {dimension_numbers = #tpu.dot_dimension_numbers<[1], [0], [0], [1], [0, 0, 1, 1], [], []>} : vector<8x32xf32>, vector<32x16xf32>, vector<8x16xf32> -> vector<8x16xf32>
    %451 = vector.broadcast %449 : vector<1x16xf32> to vector<8x16xf32>
    %452 = arith.addf %450, %451 : vector<8x16xf32>
    %c0_66 = arith.constant 0 : index
    %c0_67 = arith.constant 0 : index
    %453 = vector.load %arg12[%c0_66, %c0_67] : memref<8x16xf32, #tpu.memory_space<vmem>>, vector<8x16xf32>
    tpu.vector_store %arg12[%c0_66, %c0_67], %452 {strides = array<i32>} : memref<8x16xf32, #tpu.memory_space<vmem>>, vector<8x16xf32>,
    return
  }
}

</mosaic_0001>

<llo_original>
// kernel: tpu_custom_call.1
$region0: #{tpu_custom_call.1}
  #allocation0 [shape = 'u32[]', space=smem, size = 0x4, offset = 0x4, fixed_abs, tag = 'smem constant byte address 0x4 - core index']
  #allocation1 [shape = 'u32[144,128]{1,0:T(1,128)}', space=vmem, size = 0x12000, scoped, tag = 'internal scratch']
  %s0 = inlined_call_operand.vmem [shape: f32[8,64], index: 0, kind: input, shape index: {}]
  %s1 = inlined_call_operand.hbm [shape: f32[64,128], index: 1, kind: input, shape index: {}]
  %s2 = inlined_call_operand.vmem [shape: f32[32,128], index: 2, kind: input, shape index: {}]
  %s3 = inlined_call_operand.vmem [shape: f32[1,128], index: 3, kind: input, shape index: {}]
  %s4 = inlined_call_operand.hbm [shape: f32[32,256], index: 4, kind: input, shape index: {}]
  %s5 = inlined_call_operand.vmem [shape: f32[1,128], index: 5, kind: input, shape index: {}]
  %s6 = inlined_call_operand.hbm [shape: f32[32,32], index: 6, kind: input, shape index: {}]
  %s7 = inlined_call_operand.vmem [shape: f32[1,32], index: 7, kind: input, shape index: {}]
  %s8 = inlined_call_operand.hbm [shape: f32[32,32], index: 8, kind: input, shape index: {}]
  %s9 = inlined_call_operand.vmem [shape: f32[1,32], index: 9, kind: input, shape index: {}]
  %s10 = inlined_call_operand.vmem [shape: f32[32,16], index: 10, kind: input, shape index: {}]
  %s11 = inlined_call_operand.vmem [shape: f32[1,16], index: 11, kind: input, shape index: {}]
  %s12 = inlined_call_operand.hbm [shape: f32[8,16], index: 12, kind: output, shape index: {}]
  %s13 = sld [smem:[#allocation0]]
  $region74: #{tpu_custom_call.1} parent=0
    _
  %s15 = ssub.s32 1, %s13
  %s16 = scalar_select 0, %s15, %s13
  $region1: #{tpu_custom_call.1} parent=0
    #allocation2 [shape = 'u8[32768]{0}', space=vmem, size = 0x8000, scoped, tag = 'input window, operand 1, single buffered']
    #allocation3 [shape = 's32[1]{0}', space=sflag, size = 0x4, scoped, tag = 'scoped memory for tpu_custom_call.1']
    #allocation4 [shape = 's32[1]{0}', space=sflag, size = 0x4, scoped, tag = 'scoped memory for tpu_custom_call.1']
    #allocation5 [shape = 'u8[32768]{0}', space=vmem, size = 0x8000, scoped, tag = 'input window, operand 4, single buffered']
    #allocation6 [shape = 's32[1]{0}', space=sflag, size = 0x4, scoped, tag = 'scoped memory for tpu_custom_call.1']
    #allocation7 [shape = 'u8[16384]{0}', space=vmem, size = 0x4000, scoped, tag = 'input window, operand 6, single buffered']
    #allocation8 [shape = 'u8[16384]{0}', space=vmem, size = 0x4000, scoped, tag = 'input window, operand 8, single buffered']
    #allocation9 [shape = 's32[1]{0}', space=sflag, size = 0x4, scoped, tag = 'scoped memory for tpu_custom_call.1']
    #allocation10 [shape = 'u8[4096]{0}', space=vmem, size = 0x1000, scoped, tag = 'output window, operand 0, single buffered']
    %17 = vsyncpa [#allocation3], 0
    %18 = vsyncpa [#allocation6], 0
    %19 = vsyncpa [#allocation9], 0
    %20 = vsyncpa [#allocation4], 0
    // Predicated region
    $region2: #{tpu_custom_call.1} parent=1 // pred_check
      _
    $region3: #{tpu_custom_call.1} parent=1 // pred_check_branch
      %22 = sbr.rel (0) target = $region5
    $region4: #{tpu_custom_call.1} parent=1 // pred_region
      _
    $region5: #{tpu_custom_call.1} parent=1 // pred_fallthru
      _
    // Predicated region
    $region6: #{tpu_custom_call.1} parent=1 // pred_check
      _
    $region7: #{tpu_custom_call.1} parent=1 // pred_check_branch
      %24 = sbr.rel (0) target = $region9
    $region8: #{tpu_custom_call.1} parent=1 // pred_region
      %s26 = ssub.s32 1024, 1024
      %27 = vsyncadd [#allocation3], %s26
      %s28 = sshll.u32 [#allocation2], 4
      %s29 = int_to_ptr.vmem [resolvable:$true] %s28
      %34 = dma.hbm_to_vmem [thread:$0]  %s1, 1024, %s29, [#allocation3], 128, 128, 8
    $region9: #{tpu_custom_call.1} parent=1 // pred_fallthru
      _
    // Predicated region
    $region10: #{tpu_custom_call.1} parent=1 // pred_check
      _
    $region11: #{tpu_custom_call.1} parent=1 // pred_check_branch
      %36 = sbr.rel (0) target = $region13
    $region12: #{tpu_custom_call.1} parent=1 // pred_region
      _
    $region13: #{tpu_custom_call.1} parent=1 // pred_fallthru
      _
    // Predicated region
    $region14: #{tpu_custom_call.1} parent=1 // pred_check
      _
    $region15: #{tpu_custom_call.1} parent=1 // pred_check_branch
      %38 = sbr.rel (0) target = $region17
    $region16: #{tpu_custom_call.1} parent=1 // pred_region
      _
    $region17: #{tpu_custom_call.1} parent=1 // pred_fallthru
      _
    // Predicated region
    $region18: #{tpu_custom_call.1} parent=1 // pred_check
      _
    $region19: #{tpu_custom_call.1} parent=1 // pred_check_branch
      %40 = sbr.rel (0) target = $region21
    $region20: #{tpu_custom_call.1} parent=1 // pred_region
      %s42 = ssub.s32 1024, 1024
      %43 = vsyncadd [#allocation6], %s42
      %s44 = sshll.u32 [#allocation5], 4
      %s45 = int_to_ptr.vmem [resolvable:$true] %s44
      %50 = dma.hbm_to_vmem [thread:$0]  %s4, 1024, %s45, [#allocation6], 256, 256, 16
    $region21: #{tpu_custom_call.1} parent=1 // pred_fallthru
      _
    // Predicated region
    $region22: #{tpu_custom_call.1} parent=1 // pred_check
      _
    $region23: #{tpu_custom_call.1} parent=1 // pred_check_branch
      %52 = sbr.rel (0) target = $region25
    $region24: #{tpu_custom_call.1} parent=1 // pred_region
      _
    $region25: #{tpu_custom_call.1} parent=1 // pred_fallthru
      _
    // Predicated region
    $region26: #{tpu_custom_call.1} parent=1 // pred_check
      _
    $region27: #{tpu_custom_call.1} parent=1 // pred_check_branch
      %54 = sbr.rel (0) target = $region29
    $region28: #{tpu_custom_call.1} parent=1 // pred_region
      %s56 = ssub.s32 512, 512
      %57 = vsyncadd [#allocation6], %s56
      %s58 = sshll.u32 [#allocation7], 4
      %s59 = int_to_ptr.vmem [resolvable:$true] %s58
      %64 = dma.hbm_to_vmem [thread:$0]  %s6, 512, %s59, [#allocation6], 128, 128, 8
    $region29: #{tpu_custom_call.1} parent=1 // pred_fallthru
      _
    // Predicated region
    $region30: #{tpu_custom_call.1} parent=1 // pred_check
      _
    $region31: #{tpu_custom_call.1} parent=1 // pred_check_branch
      %66 = sbr.rel (0) target = $region33
    $region32: #{tpu_custom_call.1} parent=1 // pred_region
      _
    $region33: #{tpu_custom_call.1} parent=1 // pred_fallthru
      _
    // Predicated region
    $region34: #{tpu_custom_call.1} parent=1 // pred_check
      _
    $region35: #{tpu_custom_call.1} parent=1 // pred_check_branch
      %68 = sbr.rel (0) target = $region37
    $region36: #{tpu_custom_call.1} parent=1 // pred_region
      %s70 = ssub.s32 512, 512
      %71 = vsyncadd [#allocation9], %s70
      %s72 = sshll.u32 [#allocation8], 4
      %s73 = int_to_ptr.vmem [resolvable:$true] %s72
      %78 = dma.hbm_to_vmem [thread:$0]  %s8, 512, %s73, [#allocation9], 128, 128, 8
    $region37: #{tpu_custom_call.1} parent=1 // pred_fallthru
      _
    // Predicated region
    $region38: #{tpu_custom_call.1} parent=1 // pred_check
      _
    $region39: #{tpu_custom_call.1} parent=1 // pred_check_branch
      %80 = sbr.rel (0) target = $region41
    $region40: #{tpu_custom_call.1} parent=1 // pred_region
      _
    $region41: #{tpu_custom_call.1} parent=1 // pred_fallthru
      _
    // Predicated region
    $region42: #{tpu_custom_call.1} parent=1 // pred_check
      _
    $region43: #{tpu_custom_call.1} parent=1 // pred_check_branch
      %82 = sbr.rel (0) target = $region45
    $region44: #{tpu_custom_call.1} parent=1 // pred_region
      _
    $region45: #{tpu_custom_call.1} parent=1 // pred_fallthru
      _
    // Predicated region
    $region46: #{tpu_custom_call.1} parent=1 // pred_check
      _
    $region47: #{tpu_custom_call.1} parent=1 // pred_check_branch
      %84 = sbr.rel (0) target = $region49
    $region48: #{tpu_custom_call.1} parent=1 // pred_region
      _
    $region49: #{tpu_custom_call.1} parent=1 // pred_fallthru
      _
    // Predicated region
    $region50: #{tpu_custom_call.1} parent=1 // pred_check
      _
    $region51: #{tpu_custom_call.1} parent=1 // pred_check_branch
      %86 = sbr.rel (0) target = $region53
    $region52: #{tpu_custom_call.1} parent=1 // pred_region
      %87 = dma.done [#allocation3], 1024
    $region53: #{tpu_custom_call.1} parent=1 // pred_fallthru
      _
    // Predicated region
    $region54: #{tpu_custom_call.1} parent=1 // pred_check
      _
    $region55: #{tpu_custom_call.1} parent=1 // pred_check_branch
      %89 = sbr.rel (0) target = $region57
    $region56: #{tpu_custom_call.1} parent=1 // pred_region
      %90 = dma.done [#allocation6], 1024
    $region57: #{tpu_custom_call.1} parent=1 // pred_fallthru
      _
    // Predicated region
    $region58: #{tpu_custom_call.1} parent=1 // pred_check
      _
    $region59: #{tpu_custom_call.1} parent=1 // pred_check_branch
      %92 = sbr.rel (0) target = $region61
    $region60: #{tpu_custom_call.1} parent=1 // pred_region
      %93 = dma.done [#allocation6], 512
    $region61: #{tpu_custom_call.1} parent=1 // pred_fallthru
      _
    // Predicated region
    $region62: #{tpu_custom_call.1} parent=1 // pred_check
      _
    $region63: #{tpu_custom_call.1} parent=1 // pred_check_branch
      %95 = sbr.rel (0) target = $region65
    $region64: #{tpu_custom_call.1} parent=1 // pred_region
      %96 = dma.done [#allocation9], 512
    $region65: #{tpu_custom_call.1} parent=1 // pred_fallthru
      _
    %v97 = vld [vmem:[%s0] sm:$0xff]
    %v98 = vld [vmem:[#allocation2] sm:$0xff]
    %v99 = vld [vmem:[#allocation2 + $0x8] sm:$0xff]
    %v100 = vld [vmem:[#allocation2 + $0x10] sm:$0xff]
    %v101 = vld [vmem:[#allocation2 + $0x18] sm:$0xff]
    %v102 = vld [vmem:[#allocation2 + $0x20] sm:$0xff]
    %v103 = vld [vmem:[#allocation2 + $0x28] sm:$0xff]
    %v104 = vld [vmem:[#allocation2 + $0x30] sm:$0xff]
    %v105 = vld [vmem:[#allocation2 + $0x38] sm:$0xff]
    %v106 = vld [vmem:[%s2] sm:$0xff]
    %v107 = vld [vmem:[%s2 + $0x8] sm:$0xff]
    %v108 = vld [vmem:[%s2 + $0x10] sm:$0xff]
    %v109 = vld [vmem:[%s2 + $0x18] sm:$0xff]
    %v110 = vld [vmem:[%s3] sm:$0x1]
    %v111 = vld [vmem:[#allocation5] sm:$0xff]
    %v112 = vld [vmem:[#allocation5 + $0x8] sm:$0xff]
    %v113 = vld [vmem:[#allocation5 + $0x10] sm:$0xff]
    %v114 = vld [vmem:[#allocation5 + $0x18] sm:$0xff]
    %v115 = vld [vmem:[#allocation5 + $0x20] sm:$0xff]
    %v116 = vld [vmem:[#allocation5 + $0x28] sm:$0xff]
    %v117 = vld [vmem:[#allocation5 + $0x30] sm:$0xff]
    %v118 = vld [vmem:[#allocation5 + $0x38] sm:$0xff]
    %v119 = vld [vmem:[%s5] sm:$0x1]
    %v121 = vlaneseq
    %v122 = vshrl.u32 %v121, 7
    %v123 = vsub.s32 0, %v122
    %v124 = vrot.slane %v110, %v123
    %vm126 = vcmask 523264
    %v128 = vsel %vm126, %v97, 0
    %130 = vmatprep.subr.mxu0 0.0
    %131 = vmatpush1.msra.mxu0 0.0
    %132 = vmatprep.subr.mxu0 0.0
    %133 = vmatpush1.msra.mxu0 0.0
    %134 = vmatprep.subr.mxu0 0.0
    %135 = vmatpush1.msra.mxu0 0.0
    %136 = vmatprep.subr.mxu0 0.0
    %137 = vmatpush1.msra.mxu0 0.0
    %138 = vmatprep.subr.mxu0 0.0
    %139 = vmatpush1.msra.mxu0 0.0
    %140 = vmatprep.subr.mxu0 0.0
    %141 = vmatpush1.msra.mxu0 0.0
    %142 = vmatprep.subr.mxu0 0.0
    %143 = vmatpush1.msra.mxu0 0.0
    %144 = vmatprep.subr.mxu0 0.0
    %145 = vmatpush1.msra.mxu0 0.0
    %146 = vmatprep.subr.mxu0 0.0
    %147 = vmatpush1.msra.mxu0 %v105
    %148 = vmatprep.subr.mxu0 0.0
    %149 = vmatpush1.msra.mxu0 %v104
    %150 = vmatprep.subr.mxu0 0.0
    %151 = vmatpush1.msra.mxu0 %v103
    %152 = vmatprep.subr.mxu0 0.0
    %153 = vmatpush1.msra.mxu0 %v102
    %154 = vmatprep.subr.mxu0 0.0
    %155 = vmatpush1.msra.mxu0 %v101
    %156 = vmatprep.subr.mxu0 0.0
    %157 = vmatpush1.msra.mxu0 %v100
    %158 = vmatprep.subr.mxu0 0.0
    %159 = vmatpush1.msra.mxu0 %v99
    %160 = vmatprep.subr.mxu0 0.0
    %161 = vmatpush1.msra.mxu0 %v98
    %162 = vmatprep.subr.mxu0 0.0
    %163 = vmatpush2.msra.mxu0 0.0
    %164 = vmatprep.subr.mxu0 0.0
    %165 = vmatpush2.msra.mxu0 0.0
    %166 = vmatprep.subr.mxu0 0.0
    %167 = vmatpush2.msra.mxu0 0.0
    %168 = vmatprep.subr.mxu0 0.0
    %169 = vmatpush2.msra.mxu0 0.0
    %170 = vmatprep.subr.mxu0 0.0
    %171 = vmatpush2.msra.mxu0 0.0
    %172 = vmatprep.subr.mxu0 0.0
    %173 = vmatpush2.msra.mxu0 0.0
    %174 = vmatprep.subr.mxu0 0.0
    %175 = vmatpush2.msra.mxu0 0.0
    %176 = vmatprep.subr.mxu0 0.0
    %177 = vmatpush2.msra.mxu0 0.0
    %178 = vmatprep.subr.mxu0 0.0
    %179 = vmatpush2.msra.mxu0 0.0
    %180 = vmatprep.subr.mxu0 0.0
    %181 = vmatpush2.msra.mxu0 0.0
    %182 = vmatprep.subr.mxu0 0.0
    %183 = vmatpush2.msra.mxu0 0.0
    %184 = vmatprep.subr.mxu0 0.0
    %185 = vmatpush2.msra.mxu0 0.0
    %186 = vmatprep.subr.mxu0 0.0
    %187 = vmatpush2.msra.mxu0 0.0
    %188 = vmatprep.subr.mxu0 0.0
    %189 = vmatpush2.msra.mxu0 0.0
    %190 = vmatprep.subr.mxu0 0.0
    %191 = vmatpush2.msra.mxu0 0.0
    %192 = vmatprep.subr.mxu0 0.0
    %193 = vmatpush2.msra.mxu0 0.0
    %194 = vmatprep.mubr.f32.mxu0 0.0
    %195 = vmatmul.mubr.f32.gmra.mxu0 %v128
    %v196 = vpop.f32.mrf.mxu0
    %v197 = vadd.f32 %v124, %v196
    %v198 = vpop.f32.mrf.mxu0
    %199 = vdwg.mxu0
    %v200 = vlaneseq
    %v201 = vshrl.u32 %v200, 7
    %vm202 = vcmp.eq.s32.totalorder %v201, 0
    %vm203 = vcmask 261120
    %v205 = vsel %vm203, 0.0, 0
    %207 = vmatprep.subr.mxu0 0.0
    %208 = vmatpush1.msra.mxu0 0.0
    %209 = vmatprep.subr.mxu0 0.0
    %210 = vmatpush1.msra.mxu0 0.0
    %211 = vmatprep.subr.mxu0 0.0
    %212 = vmatpush1.msra.mxu0 0.0
    %213 = vmatprep.subr.mxu0 0.0
    %214 = vmatpush1.msra.mxu0 0.0
    %215 = vmatprep.subr.mxu0 0.0
    %216 = vmatpush1.msra.mxu0 0.0
    %217 = vmatprep.subr.mxu0 0.0
    %218 = vmatpush1.msra.mxu0 0.0
    %219 = vmatprep.subr.mxu0 0.0
    %220 = vmatpush1.msra.mxu0 0.0
    %221 = vmatprep.subr.mxu0 0.0
    %222 = vmatpush1.msra.mxu0 0.0
    %223 = vmatprep.subr.mxu0 0.0
    %224 = vmatpush1.msra.mxu0 0.0
    %225 = vmatprep.subr.mxu0 0.0
    %226 = vmatpush1.msra.mxu0 0.0
    %227 = vmatprep.subr.mxu0 0.0
    %228 = vmatpush1.msra.mxu0 0.0
    %229 = vmatprep.subr.mxu0 0.0
    %230 = vmatpush1.msra.mxu0 0.0
    %231 = vmatprep.subr.mxu0 0.0
    %232 = vmatpush1.msra.mxu0 %v109
    %233 = vmatprep.subr.mxu0 0.0
    %234 = vmatpush1.msra.mxu0 %v108
    %235 = vmatprep.subr.mxu0 0.0
    %236 = vmatpush1.msra.mxu0 %v107
    %237 = vmatprep.subr.mxu0 0.0
    %238 = vmatpush1.msra.mxu0 %v106
    %239 = vmatprep.subr.mxu0 0.0
    %240 = vmatpush2.msra.mxu0 0.0
    %241 = vmatprep.subr.mxu0 0.0
    %242 = vmatpush2.msra.mxu0 0.0
    %243 = vmatprep.subr.mxu0 0.0
    %244 = vmatpush2.msra.mxu0 0.0
    %245 = vmatprep.subr.mxu0 0.0
    %246 = vmatpush2.msra.mxu0 0.0
    %247 = vmatprep.subr.mxu0 0.0
    %248 = vmatpush2.msra.mxu0 0.0
    %249 = vmatprep.subr.mxu0 0.0
    %250 = vmatpush2.msra.mxu0 0.0
    %251 = vmatprep.subr.mxu0 0.0
    %252 = vmatpush2.msra.mxu0 0.0
    %253 = vmatprep.subr.mxu0 0.0
    %254 = vmatpush2.msra.mxu0 0.0
    %255 = vmatprep.subr.mxu0 0.0
    %256 = vmatpush2.msra.mxu0 0.0
    %257 = vmatprep.subr.mxu0 0.0
    %258 = vmatpush2.msra.mxu0 0.0
    %259 = vmatprep.subr.mxu0 0.0
    %260 = vmatpush2.msra.mxu0 0.0
    %261 = vmatprep.subr.mxu0 0.0
    %262 = vmatpush2.msra.mxu0 0.0
    %263 = vmatprep.subr.mxu0 0.0
    %264 = vmatpush2.msra.mxu0 0.0
    %265 = vmatprep.subr.mxu0 0.0
    %266 = vmatpush2.msra.mxu0 0.0
    %267 = vmatprep.subr.mxu0 0.0
    %268 = vmatpush2.msra.mxu0 0.0
    %269 = vmatprep.subr.mxu0 0.0
    %270 = vmatpush2.msra.mxu0 0.0
    %271 = vmatprep.mubr.f32.mxu0 0.0
    %272 = vmatmul.mubr.f32.gmra.mxu0 %v205
    %v273 = vpop.f32.mrf.mxu0
    %v274 = vadd.f32 0.0, %v273
    %v275 = vpop.f32.mrf.mxu0
    %276 = vdwg.mxu0
    %v277 = vadd.f32 %v197, %v274
    %v278 = vxor.u32 %v277, 2147483648
    %v279 = vmul.f32 %v278, 1.442695
    %v280 = vpow.pop %v279
    %v281 = vadd.f32 %v280, 1.0
    %v282 = vrcp.pop %v281
    %v283 = vmul.f32 1.0, %v282
    %v284 = vtanh.pop %v277
    %v285 = vmul.f32 %v283, 0.0
    %287 = vrot.lane.b32.xlu0 %v284, 64
    %v288 = vpop.permute.xlu0 %287
    %v290 = vmul.f32 %v283, %v288
    %292 = vrot.lane.b32.xlu0 %v290, 32
    %v293 = vpop.permute.xlu0 %292
    %v295 = vadd.f32 %v285, %v293
    %v296 = vtanh.pop %v295
    %298 = vrot.lane.b32.xlu0 %v296, 64
    %v299 = vpop.permute.xlu0 %298
    %v301 = vmul.f32 %v283, %v299
    %v302 = vsel %vm202, 1, 0
    %vm303 = vcmp.eq.s32.totalorder %v302, 1
    %v304 = vlaneseq
    %v305 = vshrl.u32 %v304, 7
    %v306 = vsub.s32 0, %v305
    %v307 = vrot.slane %v301, %v306
    %v308 = vsel %vm303, %v307, 0.0
    %310 = vrot.lane.b32.xlu0 %v308, 32
    %v311 = vpop.permute.xlu0 %310
    %v312 = vsel %vm203, %v311, 0
    %314 = vmatprep.subr.mxu0 0.0
    %315 = vmatpush1.msra.mxu0 0.0
    %316 = vmatprep.subr.mxu0 0.0
    %317 = vmatpush1.msra.mxu0 0.0
    %318 = vmatprep.subr.mxu0 0.0
    %319 = vmatpush1.msra.mxu0 0.0
    %320 = vmatprep.subr.mxu0 0.0
    %321 = vmatpush1.msra.mxu0 0.0
    %322 = vmatprep.subr.mxu0 0.0
    %323 = vmatpush1.msra.mxu0 0.0
    %324 = vmatprep.subr.mxu0 0.0
    %325 = vmatpush1.msra.mxu0 0.0
    %326 = vmatprep.subr.mxu0 0.0
    %327 = vmatpush1.msra.mxu0 0.0
    %328 = vmatprep.subr.mxu0 0.0
    %329 = vmatpush1.msra.mxu0 0.0
    %330 = vmatprep.subr.mxu0 0.0
    %331 = vmatpush1.msra.mxu0 0.0
    %332 = vmatprep.subr.mxu0 0.0
    %333 = vmatpush1.msra.mxu0 0.0
    %334 = vmatprep.subr.mxu0 0.0
    %335 = vmatpush1.msra.mxu0 0.0
    %336 = vmatprep.subr.mxu0 0.0
    %337 = vmatpush1.msra.mxu0 0.0
    %338 = vmatprep.subr.mxu0 %v118
    %339 = vmatpush1.msra.mxu0 %v117
    %340 = vmatprep.subr.mxu0 %v116
    %341 = vmatpush1.msra.mxu0 %v115
    %342 = vmatprep.subr.mxu0 %v114
    %343 = vmatpush1.msra.mxu0 %v113
    %344 = vmatprep.subr.mxu0 %v112
    %345 = vmatpush1.msra.mxu0 %v111
    %346 = vmatprep.subr.mxu0 0.0
    %347 = vmatpush2.msra.mxu0 0.0
    %348 = vmatprep.subr.mxu0 0.0
    %349 = vmatpush2.msra.mxu0 0.0
    %350 = vmatprep.subr.mxu0 0.0
    %351 = vmatpush2.msra.mxu0 0.0
    %352 = vmatprep.subr.mxu0 0.0
    %353 = vmatpush2.msra.mxu0 0.0
    %354 = vmatprep.subr.mxu0 0.0
    %355 = vmatpush2.msra.mxu0 0.0
    %356 = vmatprep.subr.mxu0 0.0
    %357 = vmatpush2.msra.mxu0 0.0
    %358 = vmatprep.subr.mxu0 0.0
    %359 = vmatpush2.msra.mxu0 0.0
    %360 = vmatprep.subr.mxu0 0.0
    %361 = vmatpush2.msra.mxu0 0.0
    %362 = vmatprep.subr.mxu0 0.0
    %363 = vmatpush2.msra.mxu0 0.0
    %364 = vmatprep.subr.mxu0 0.0
    %365 = vmatpush2.msra.mxu0 0.0
    %366 = vmatprep.subr.mxu0 0.0
    %367 = vmatpush2.msra.mxu0 0.0
    %368 = vmatprep.subr.mxu0 0.0
    %369 = vmatpush2.msra.mxu0 0.0
    %370 = vmatprep.subr.mxu0 0.0
    %371 = vmatpush2.msra.mxu0 0.0
    %372 = vmatprep.subr.mxu0 0.0
    %373 = vmatpush2.msra.mxu0 0.0
    %374 = vmatprep.subr.mxu0 0.0
    %375 = vmatpush2.msra.mxu0 0.0
    %376 = vmatprep.subr.mxu0 0.0
    %377 = vmatpush2.msra.mxu0 0.0
    %378 = vmatprep.mubr.f32.mxu0 0.0
    %379 = vmatmul.mubr.f32.gmra.mxu0 %v312
    %v380 = vpop.f32.mrf.mxu0
    %v381 = vadd.f32 0.0, %v380
    %v382 = vpop.f32.mrf.mxu0
    %v383 = vadd.f32 0.0, %v382
    %384 = vdwg.mxu0
    %v386 = vrot.slane %v383, 1
    %v388 = vadd.f32 %v381, %v386
    %v389 = vadd.f32 %v388, %v119
    %v390 = vxor.u32 %v389, 2147483648
    %v391 = vmul.f32 %v390, 1.442695
    %v392 = vpow.pop %v391
    %v393 = vadd.f32 %v392, 1.0
    %v394 = vrcp.pop %v393
    %v395 = vmul.f32 1.0, %v394
    %v396 = vtanh.pop %v389
    %v397 = vmul.f32 %v395, 0.0
    %399 = vrot.lane.b32.xlu0 %v396, 64
    %v400 = vpop.permute.xlu0 %399
    %v402 = vmul.f32 %v395, %v400
    %404 = vrot.lane.b32.xlu0 %v402, 32
    %v405 = vpop.permute.xlu0 %404
    %v407 = vadd.f32 %v397, %v405
    %v408 = vtanh.pop %v407
    %410 = vrot.lane.b32.xlu0 %v408, 64
    %v411 = vpop.permute.xlu0 %410
    %v413 = vmul.f32 %v395, %v411
    %v414 = vlaneseq
    %v415 = vshrl.u32 %v414, 7
    %v416 = vsub.s32 0, %v415
    %v417 = vrot.slane %v413, %v416
    %v418 = vsel %vm303, %v417, 0.0
    %420 = vrot.lane.b32.xlu0 %v301, 32
    %v421 = vpop.permute.xlu0 %420
    %v422 = vsel %vm203, %v421, 0
    %424 = vmatprep.subr.mxu0 0.0
    %425 = vmatpush1.msra.mxu0 0.0
    %426 = vmatprep.subr.mxu0 0.0
    %427 = vmatpush1.msra.mxu0 0.0
    %428 = vmatprep.subr.mxu0 0.0
    %429 = vmatpush1.msra.mxu0 0.0
    %430 = vmatprep.subr.mxu0 0.0
    %431 = vmatpush1.msra.mxu0 0.0
    %432 = vmatprep.subr.mxu0 0.0
    %433 = vmatpush1.msra.mxu0 0.0
    %434 = vmatprep.subr.mxu0 0.0
    %435 = vmatpush1.msra.mxu0 0.0
    %436 = vmatprep.subr.mxu0 0.0
    %437 = vmatpush1.msra.mxu0 0.0
    %438 = vmatprep.subr.mxu0 0.0
    %439 = vmatpush1.msra.mxu0 0.0
    %440 = vmatprep.subr.mxu0 0.0
    %441 = vmatpush1.msra.mxu0 0.0
    %442 = vmatprep.subr.mxu0 0.0
    %443 = vmatpush1.msra.mxu0 0.0
    %444 = vmatprep.subr.mxu0 0.0
    %445 = vmatpush1.msra.mxu0 0.0
    %446 = vmatprep.subr.mxu0 0.0
    %447 = vmatpush1.msra.mxu0 0.0
    %448 = vmatprep.subr.mxu0 0.0
    %449 = vmatpush1.msra.mxu0 %v109
    %450 = vmatprep.subr.mxu0 0.0
    %451 = vmatpush1.msra.mxu0 %v108
    %452 = vmatprep.subr.mxu0 0.0
    %453 = vmatpush1.msra.mxu0 %v107
    %454 = vmatprep.subr.mxu0 0.0
    %455 = vmatpush1.msra.mxu0 %v106
    %456 = vmatprep.subr.mxu0 0.0
    %457 = vmatpush2.msra.mxu0 0.0
    %458 = vmatprep.subr.mxu0 0.0
    %459 = vmatpush2.msra.mxu0 0.0
    %460 = vmatprep.subr.mxu0 0.0
    %461 = vmatpush2.msra.mxu0 0.0
    %462 = vmatprep.subr.mxu0 0.0
    %463 = vmatpush2.msra.mxu0 0.0
    %464 = vmatprep.subr.mxu0 0.0
    %465 = vmatpush2.msra.mxu0 0.0
    %466 = vmatprep.subr.mxu0 0.0
    %467 = vmatpush2.msra.mxu0 0.0
    %468 = vmatprep.subr.mxu0 0.0
    %469 = vmatpush2.msra.mxu0 0.0
    %470 = vmatprep.subr.mxu0 0.0
    %471 = vmatpush2.msra.mxu0 0.0
    %472 = vmatprep.subr.mxu0 0.0
    %473 = vmatpush2.msra.mxu0 0.0
    %474 = vmatprep.subr.mxu0 0.0
    %475 = vmatpush2.msra.mxu0 0.0
    %476 = vmatprep.subr.mxu0 0.0
    %477 = vmatpush2.msra.mxu0 0.0
    %478 = vmatprep.subr.mxu0 0.0
    %479 = vmatpush2.msra.mxu0 0.0
    %480 = vmatprep.subr.mxu0 0.0
    %481 = vmatpush2.msra.mxu0 0.0
    %482 = vmatprep.subr.mxu0 0.0
    %483 = vmatpush2.msra.mxu0 0.0
    %484 = vmatprep.subr.mxu0 0.0
    %485 = vmatpush2.msra.mxu0 0.0
    %486 = vmatprep.subr.mxu0 0.0
    %487 = vmatpush2.msra.mxu0 0.0
    %488 = vmatprep.mubr.f32.mxu0 0.0
    %489 = vmatmul.mubr.f32.gmra.mxu0 %v422
    %v490 = vpop.f32.mrf.mxu0
    %v491 = vadd.f32 0.0, %v490
    %v492 = vpop.f32.mrf.mxu0
    %493 = vdwg.mxu0
    %v495 = vrot.slane %v491, 7
    %v497 = vadd.f32 %v197, %v495
    %v498 = vxor.u32 %v497, 2147483648
    %v499 = vmul.f32 %v498, 1.442695
    %v500 = vpow.pop %v499
    %v501 = vadd.f32 %v500, 1.0
    %v502 = vrcp.pop %v501
    %v503 = vmul.f32 1.0, %v502
    %v504 = vtanh.pop %v497
    %v506 = vrot.slane %v295, 7
    %v508 = vmul.f32 %v503, %v506
    %510 = vrot.lane.b32.xlu0 %v504, 64
    %v511 = vpop.permute.xlu0 %510
    %v513 = vmul.f32 %v503, %v511
    %515 = vrot.lane.b32.xlu0 %v513, 32
    %v516 = vpop.permute.xlu0 %515
    %v518 = vadd.f32 %v508, %v516
    %v519 = vtanh.pop %v518
    %521 = vrot.lane.b32.xlu0 %v519, 64
    %v522 = vpop.permute.xlu0 %521
    %v524 = vmul.f32 %v503, %v522
    %v525 = vlaneseq
    %v526 = vshrl.u32 %v525, 7
    %v527 = vsub.s32 1, %v526
    %v528 = vrot.slane %v524, %v527
    %v529 = vsel %vm303, %v528, %v417
    %531 = vrot.lane.b32.xlu0 %v529, 32
    %v532 = vpop.permute.xlu0 %531
    %v533 = vsel %vm203, %v532, 0
    %535 = vmatprep.subr.mxu0 0.0
    %536 = vmatpush1.msra.mxu0 0.0
    %537 = vmatprep.subr.mxu0 0.0
    %538 = vmatpush1.msra.mxu0 0.0
    %539 = vmatprep.subr.mxu0 0.0
    %540 = vmatpush1.msra.mxu0 0.0
    %541 = vmatprep.subr.mxu0 0.0
    %542 = vmatpush1.msra.mxu0 0.0
    %543 = vmatprep.subr.mxu0 0.0
    %544 = vmatpush1.msra.mxu0 0.0
    %545 = vmatprep.subr.mxu0 0.0
    %546 = vmatpush1.msra.mxu0 0.0
    %547 = vmatprep.subr.mxu0 0.0
    %548 = vmatpush1.msra.mxu0 0.0
    %549 = vmatprep.subr.mxu0 0.0
    %550 = vmatpush1.msra.mxu0 0.0
    %551 = vmatprep.subr.mxu0 0.0
    %552 = vmatpush1.msra.mxu0 0.0
    %553 = vmatprep.subr.mxu0 0.0
    %554 = vmatpush1.msra.mxu0 0.0
    %555 = vmatprep.subr.mxu0 0.0
    %556 = vmatpush1.msra.mxu0 0.0
    %557 = vmatprep.subr.mxu0 0.0
    %558 = vmatpush1.msra.mxu0 0.0
    %559 = vmatprep.subr.mxu0 %v118
    %560 = vmatpush1.msra.mxu0 %v117
    %561 = vmatprep.subr.mxu0 %v116
    %562 = vmatpush1.msra.mxu0 %v115
    %563 = vmatprep.subr.mxu0 %v114
    %564 = vmatpush1.msra.mxu0 %v113
    %565 = vmatprep.subr.mxu0 %v112
    %566 = vmatpush1.msra.mxu0 %v111
    %567 = vmatprep.subr.mxu0 0.0
    %568 = vmatpush2.msra.mxu0 0.0
    %569 = vmatprep.subr.mxu0 0.0
    %570 = vmatpush2.msra.mxu0 0.0
    %571 = vmatprep.subr.mxu0 0.0
    %572 = vmatpush2.msra.mxu0 0.0
    %573 = vmatprep.subr.mxu0 0.0
    %574 = vmatpush2.msra.mxu0 0.0
    %575 = vmatprep.subr.mxu0 0.0
    %576 = vmatpush2.msra.mxu0 0.0
    %577 = vmatprep.subr.mxu0 0.0
    %578 = vmatpush2.msra.mxu0 0.0
    %579 = vmatprep.subr.mxu0 0.0
    %580 = vmatpush2.msra.mxu0 0.0
    %581 = vmatprep.subr.mxu0 0.0
    %582 = vmatpush2.msra.mxu0 0.0
    %583 = vmatprep.subr.mxu0 0.0
    %584 = vmatpush2.msra.mxu0 0.0
    %585 = vmatprep.subr.mxu0 0.0
    %586 = vmatpush2.msra.mxu0 0.0
    %587 = vmatprep.subr.mxu0 0.0
    %588 = vmatpush2.msra.mxu0 0.0
    %589 = vmatprep.subr.mxu0 0.0
    %590 = vmatpush2.msra.mxu0 0.0
    %591 = vmatprep.subr.mxu0 0.0
    %592 = vmatpush2.msra.mxu0 0.0
    %593 = vmatprep.subr.mxu0 0.0
    %594 = vmatpush2.msra.mxu0 0.0
    %595 = vmatprep.subr.mxu0 0.0
    %596 = vmatpush2.msra.mxu0 0.0
    %597 = vmatprep.subr.mxu0 0.0
    %598 = vmatpush2.msra.mxu0 0.0
    %599 = vmatprep.mubr.f32.mxu0 0.0
    %600 = vmatmul.mubr.f32.gmra.mxu0 %v533
    %v601 = vpop.f32.mrf.mxu0
    %v602 = vadd.f32 0.0, %v601
    %v603 = vpop.f32.mrf.mxu0
    %v604 = vadd.f32 0.0, %v603
    %605 = vdwg.mxu0
    %v607 = vrot.slane %v604, 1
    %v609 = vadd.f32 %v602, %v607
    %v610 = vadd.f32 %v609, %v119
    %v611 = vxor.u32 %v610, 2147483648
    %v612 = vmul.f32 %v611, 1.442695
    %v613 = vpow.pop %v612
    %v614 = vadd.f32 %v613, 1.0
    %v615 = vrcp.pop %v614
    %v616 = vmul.f32 1.0, %v615
    %v617 = vtanh.pop %v610
    %v618 = vmul.f32 %v616, %v407
    %620 = vrot.lane.b32.xlu0 %v617, 64
    %v621 = vpop.permute.xlu0 %620
    %v623 = vmul.f32 %v616, %v621
    %625 = vrot.lane.b32.xlu0 %v623, 32
    %v626 = vpop.permute.xlu0 %625
    %v628 = vadd.f32 %v618, %v626
    %v629 = vtanh.pop %v628
    %631 = vrot.lane.b32.xlu0 %v629, 64
    %v632 = vpop.permute.xlu0 %631
    %v634 = vmul.f32 %v616, %v632
    %vm635 = vcmp.eq.s32.totalorder %v201, 1
    %v636 = vsel %vm635, 1, 0
    %vm637 = vcmp.eq.s32.totalorder %v636, 1
    %v638 = vlaneseq
    %v639 = vshrl.u32 %v638, 7
    %v640 = vsub.s32 0, %v639
    %v641 = vrot.slane %v634, %v640
    %v642 = vsel %vm637, %v641, %v418
    %v644 = vrot.slane %v524, 1
    %645 = vrot.lane.b32.xlu0 %v644, 32
    %v646 = vpop.permute.xlu0 %645
    %v647 = vsel %vm203, %v646, 0
    %649 = vmatprep.subr.mxu0 0.0
    %650 = vmatpush1.msra.mxu0 0.0
    %651 = vmatprep.subr.mxu0 0.0
    %652 = vmatpush1.msra.mxu0 0.0
    %653 = vmatprep.subr.mxu0 0.0
    %654 = vmatpush1.msra.mxu0 0.0
    %655 = vmatprep.subr.mxu0 0.0
    %656 = vmatpush1.msra.mxu0 0.0
    %657 = vmatprep.subr.mxu0 0.0
    %658 = vmatpush1.msra.mxu0 0.0
    %659 = vmatprep.subr.mxu0 0.0
    %660 = vmatpush1.msra.mxu0 0.0
    %661 = vmatprep.subr.mxu0 0.0
    %662 = vmatpush1.msra.mxu0 0.0
    %663 = vmatprep.subr.mxu0 0.0
    %664 = vmatpush1.msra.mxu0 0.0
    %665 = vmatprep.subr.mxu0 0.0
    %666 = vmatpush1.msra.mxu0 0.0
    %667 = vmatprep.subr.mxu0 0.0
    %668 = vmatpush1.msra.mxu0 0.0
    %669 = vmatprep.subr.mxu0 0.0
    %670 = vmatpush1.msra.mxu0 0.0
    %671 = vmatprep.subr.mxu0 0.0
    %672 = vmatpush1.msra.mxu0 0.0
    %673 = vmatprep.subr.mxu0 0.0
    %674 = vmatpush1.msra.mxu0 %v109
    %675 = vmatprep.subr.mxu0 0.0
    %676 = vmatpush1.msra.mxu0 %v108
    %677 = vmatprep.subr.mxu0 0.0
    %678 = vmatpush1.msra.mxu0 %v107
    %679 = vmatprep.subr.mxu0 0.0
    %680 = vmatpush1.msra.mxu0 %v106
    %681 = vmatprep.subr.mxu0 0.0
    %682 = vmatpush2.msra.mxu0 0.0
    %683 = vmatprep.subr.mxu0 0.0
    %684 = vmatpush2.msra.mxu0 0.0
    %685 = vmatprep.subr.mxu0 0.0
    %686 = vmatpush2.msra.mxu0 0.0
    %687 = vmatprep.subr.mxu0 0.0
    %688 = vmatpush2.msra.mxu0 0.0
    %689 = vmatprep.subr.mxu0 0.0
    %690 = vmatpush2.msra.mxu0 0.0
    %691 = vmatprep.subr.mxu0 0.0
    %692 = vmatpush2.msra.mxu0 0.0
    %693 = vmatprep.subr.mxu0 0.0
    %694 = vmatpush2.msra.mxu0 0.0
    %695 = vmatprep.subr.mxu0 0.0
    %696 = vmatpush2.msra.mxu0 0.0
    %697 = vmatprep.subr.mxu0 0.0
    %698 = vmatpush2.msra.mxu0 0.0
    %699 = vmatprep.subr.mxu0 0.0
    %700 = vmatpush2.msra.mxu0 0.0
    %701 = vmatprep.subr.mxu0 0.0
    %702 = vmatpush2.msra.mxu0 0.0
    %703 = vmatprep.subr.mxu0 0.0
    %704 = vmatpush2.msra.mxu0 0.0
    %705 = vmatprep.subr.mxu0 0.0
    %706 = vmatpush2.msra.mxu0 0.0
    %707 = vmatprep.subr.mxu0 0.0
    %708 = vmatpush2.msra.mxu0 0.0
    %709 = vmatprep.subr.mxu0 0.0
    %710 = vmatpush2.msra.mxu0 0.0
    %711 = vmatprep.subr.mxu0 0.0
    %712 = vmatpush2.msra.mxu0 0.0
    %713 = vmatprep.mubr.f32.mxu0 0.0
    %714 = vmatmul.mubr.f32.gmra.mxu0 %v647
    %v715 = vpop.f32.mrf.mxu0
    %v716 = vadd.f32 0.0, %v715
    %v717 = vpop.f32.mrf.mxu0
    %718 = vdwg.mxu0
    %v720 = vrot.slane %v716, 6
    %v722 = vadd.f32 %v197, %v720
    %v723 = vxor.u32 %v722, 2147483648
    %v724 = vmul.f32 %v723, 1.442695
    %v725 = vpow.pop %v724
    %v726 = vadd.f32 %v725, 1.0
    %v727 = vrcp.pop %v726
    %v728 = vmul.f32 1.0, %v727
    %v729 = vtanh.pop %v722
    %v731 = vrot.slane %v518, 7
    %v733 = vmul.f32 %v728, %v731
    %735 = vrot.lane.b32.xlu0 %v729, 64
    %v736 = vpop.permute.xlu0 %735
    %v738 = vmul.f32 %v728, %v736
    %740 = vrot.lane.b32.xlu0 %v738, 32
    %v741 = vpop.permute.xlu0 %740
    %v743 = vadd.f32 %v733, %v741
    %v744 = vtanh.pop %v743
    %746 = vrot.lane.b32.xlu0 %v744, 64
    %v747 = vpop.permute.xlu0 %746
    %v749 = vmul.f32 %v728, %v747
    %v750 = vlaneseq
    %v751 = vshrl.u32 %v750, 7
    %v752 = vsub.s32 2, %v751
    %v753 = vrot.slane %v749, %v752
    %v754 = vsel %vm303, %v753, %v641
    %756 = vrot.lane.b32.xlu0 %v754, 32
    %v757 = vpop.permute.xlu0 %756
    %v758 = vsel %vm203, %v757, 0
    %760 = vmatprep.subr.mxu0 0.0
    %761 = vmatpush1.msra.mxu0 0.0
    %762 = vmatprep.subr.mxu0 0.0
    %763 = vmatpush1.msra.mxu0 0.0
    %764 = vmatprep.subr.mxu0 0.0
    %765 = vmatpush1.msra.mxu0 0.0
    %766 = vmatprep.subr.mxu0 0.0
    %767 = vmatpush1.msra.mxu0 0.0
    %768 = vmatprep.subr.mxu0 0.0
    %769 = vmatpush1.msra.mxu0 0.0
    %770 = vmatprep.subr.mxu0 0.0
    %771 = vmatpush1.msra.mxu0 0.0
    %772 = vmatprep.subr.mxu0 0.0
    %773 = vmatpush1.msra.mxu0 0.0
    %774 = vmatprep.subr.mxu0 0.0
    %775 = vmatpush1.msra.mxu0 0.0
    %776 = vmatprep.subr.mxu0 0.0
    %777 = vmatpush1.msra.mxu0 0.0
    %778 = vmatprep.subr.mxu0 0.0
    %779 = vmatpush1.msra.mxu0 0.0
    %780 = vmatprep.subr.mxu0 0.0
    %781 = vmatpush1.msra.mxu0 0.0
    %782 = vmatprep.subr.mxu0 0.0
    %783 = vmatpush1.msra.mxu0 0.0
    %784 = vmatprep.subr.mxu0 %v118
    %785 = vmatpush1.msra.mxu0 %v117
    %786 = vmatprep.subr.mxu0 %v116
    %787 = vmatpush1.msra.mxu0 %v115
    %788 = vmatprep.subr.mxu0 %v114
    %789 = vmatpush1.msra.mxu0 %v113
    %790 = vmatprep.subr.mxu0 %v112
    %791 = vmatpush1.msra.mxu0 %v111
    %792 = vmatprep.subr.mxu0 0.0
    %793 = vmatpush2.msra.mxu0 0.0
    %794 = vmatprep.subr.mxu0 0.0
    %795 = vmatpush2.msra.mxu0 0.0
    %796 = vmatprep.subr.mxu0 0.0
    %797 = vmatpush2.msra.mxu0 0.0
    %798 = vmatprep.subr.mxu0 0.0
    %799 = vmatpush2.msra.mxu0 0.0
    %800 = vmatprep.subr.mxu0 0.0
    %801 = vmatpush2.msra.mxu0 0.0
    %802 = vmatprep.subr.mxu0 0.0
    %803 = vmatpush2.msra.mxu0 0.0
    %804 = vmatprep.subr.mxu0 0.0
    %805 = vmatpush2.msra.mxu0 0.0
    %806 = vmatprep.subr.mxu0 0.0
    %807 = vmatpush2.msra.mxu0 0.0
    %808 = vmatprep.subr.mxu0 0.0
    %809 = vmatpush2.msra.mxu0 0.0
    %810 = vmatprep.subr.mxu0 0.0
    %811 = vmatpush2.msra.mxu0 0.0
    %812 = vmatprep.subr.mxu0 0.0
    %813 = vmatpush2.msra.mxu0 0.0
    %814 = vmatprep.subr.mxu0 0.0
    %815 = vmatpush2.msra.mxu0 0.0
    %816 = vmatprep.subr.mxu0 0.0
    %817 = vmatpush2.msra.mxu0 0.0
    %818 = vmatprep.subr.mxu0 0.0
    %819 = vmatpush2.msra.mxu0 0.0
    %820 = vmatprep.subr.mxu0 0.0
    %821 = vmatpush2.msra.mxu0 0.0
    %822 = vmatprep.subr.mxu0 0.0
    %823 = vmatpush2.msra.mxu0 0.0
    %824 = vmatprep.mubr.f32.mxu0 0.0
    %825 = vmatmul.mubr.f32.gmra.mxu0 %v758
    %v826 = vpop.f32.mrf.mxu0
    %v827 = vadd.f32 0.0, %v826
    %v828 = vpop.f32.mrf.mxu0
    %v829 = vadd.f32 0.0, %v828
    %830 = vdwg.mxu0
    %v832 = vrot.slane %v829, 1
    %v834 = vadd.f32 %v827, %v832
    %v835 = vadd.f32 %v834, %v119
    %v836 = vxor.u32 %v835, 2147483648
    %v837 = vmul.f32 %v836, 1.442695
    %v838 = vpow.pop %v837
    %v839 = vadd.f32 %v838, 1.0
    %v840 = vrcp.pop %v839
    %v841 = vmul.f32 1.0, %v840
    %v842 = vtanh.pop %v835
    %v843 = vmul.f32 %v841, %v628
    %845 = vrot.lane.b32.xlu0 %v842, 64
    %v846 = vpop.permute.xlu0 %845
    %v848 = vmul.f32 %v841, %v846
    %850 = vrot.lane.b32.xlu0 %v848, 32
    %v851 = vpop.permute.xlu0 %850
    %v853 = vadd.f32 %v843, %v851
    %v854 = vtanh.pop %v853
    %856 = vrot.lane.b32.xlu0 %v854, 64
    %v857 = vpop.permute.xlu0 %856
    %v859 = vmul.f32 %v841, %v857
    %vm860 = vcmp.eq.s32.totalorder %v201, 2
    %v861 = vsel %vm860, 1, 0
    %vm862 = vcmp.eq.s32.totalorder %v861, 1
    %v863 = vlaneseq
    %v864 = vshrl.u32 %v863, 7
    %v865 = vsub.s32 0, %v864
    %v866 = vrot.slane %v859, %v865
    %v867 = vsel %vm862, %v866, %v642
    %v869 = vrot.slane %v749, 2
    %870 = vrot.lane.b32.xlu0 %v869, 32
    %v871 = vpop.permute.xlu0 %870
    %v872 = vsel %vm203, %v871, 0
    %874 = vmatprep.subr.mxu0 0.0
    %875 = vmatpush1.msra.mxu0 0.0
    %876 = vmatprep.subr.mxu0 0.0
    %877 = vmatpush1.msra.mxu0 0.0
    %878 = vmatprep.subr.mxu0 0.0
    %879 = vmatpush1.msra.mxu0 0.0
    %880 = vmatprep.subr.mxu0 0.0
    %881 = vmatpush1.msra.mxu0 0.0
    %882 = vmatprep.subr.mxu0 0.0
    %883 = vmatpush1.msra.mxu0 0.0
    %884 = vmatprep.subr.mxu0 0.0
    %885 = vmatpush1.msra.mxu0 0.0
    %886 = vmatprep.subr.mxu0 0.0
    %887 = vmatpush1.msra.mxu0 0.0
    %888 = vmatprep.subr.mxu0 0.0
    %889 = vmatpush1.msra.mxu0 0.0
    %890 = vmatprep.subr.mxu0 0.0
    %891 = vmatpush1.msra.mxu0 0.0
    %892 = vmatprep.subr.mxu0 0.0
    %893 = vmatpush1.msra.mxu0 0.0
    %894 = vmatprep.subr.mxu0 0.0
    %895 = vmatpush1.msra.mxu0 0.0
    %896 = vmatprep.subr.mxu0 0.0
    %897 = vmatpush1.msra.mxu0 0.0
    %898 = vmatprep.subr.mxu0 0.0
    %899 = vmatpush1.msra.mxu0 %v109
    %900 = vmatprep.subr.mxu0 0.0
    %901 = vmatpush1.msra.mxu0 %v108
    %902 = vmatprep.subr.mxu0 0.0
    %903 = vmatpush1.msra.mxu0 %v107
    %904 = vmatprep.subr.mxu0 0.0
    %905 = vmatpush1.msra.mxu0 %v106
    %906 = vmatprep.subr.mxu0 0.0
    %907 = vmatpush2.msra.mxu0 0.0
    %908 = vmatprep.subr.mxu0 0.0
    %909 = vmatpush2.msra.mxu0 0.0
    %910 = vmatprep.subr.mxu0 0.0
    %911 = vmatpush2.msra.mxu0 0.0
    %912 = vmatprep.subr.mxu0 0.0
    %913 = vmatpush2.msra.mxu0 0.0
    %914 = vmatprep.subr.mxu0 0.0
    %915 = vmatpush2.msra.mxu0 0.0
    %916 = vmatprep.subr.mxu0 0.0
    %917 = vmatpush2.msra.mxu0 0.0
    %918 = vmatprep.subr.mxu0 0.0
    %919 = vmatpush2.msra.mxu0 0.0
    %920 = vmatprep.subr.mxu0 0.0
    %921 = vmatpush2.msra.mxu0 0.0
    %922 = vmatprep.subr.mxu0 0.0
    %923 = vmatpush2.msra.mxu0 0.0
    %924 = vmatprep.subr.mxu0 0.0
    %925 = vmatpush2.msra.mxu0 0.0
    %926 = vmatprep.subr.mxu0 0.0
    %927 = vmatpush2.msra.mxu0 0.0
    %928 = vmatprep.subr.mxu0 0.0
    %929 = vmatpush2.msra.mxu0 0.0
    %930 = vmatprep.subr.mxu0 0.0
    %931 = vmatpush2.msra.mxu0 0.0
    %932 = vmatprep.subr.mxu0 0.0
    %933 = vmatpush2.msra.mxu0 0.0
    %934 = vmatprep.subr.mxu0 0.0
    %935 = vmatpush2.msra.mxu0 0.0
    %936 = vmatprep.subr.mxu0 0.0
    %937 = vmatpush2.msra.mxu0 0.0
    %938 = vmatprep.mubr.f32.mxu0 0.0
    %939 = vmatmul.mubr.f32.gmra.mxu0 %v872
    %v940 = vpop.f32.mrf.mxu0
    %v941 = vadd.f32 0.0, %v940
    %v942 = vpop.f32.mrf.mxu0
    %943 = vdwg.mxu0
    %v945 = vrot.slane %v941, 5
    %v947 = vadd.f32 %v197, %v945
    %v948 = vxor.u32 %v947, 2147483648
    %v949 = vmul.f32 %v948, 1.442695
    %v950 = vpow.pop %v949
    %v951 = vadd.f32 %v950, 1.0
    %v952 = vrcp.pop %v951
    %v953 = vmul.f32 1.0, %v952
    %v954 = vtanh.pop %v947
    %v956 = vrot.slane %v743, 7
    %v958 = vmul.f32 %v953, %v956
    %960 = vrot.lane.b32.xlu0 %v954, 64
    %v961 = vpop.permute.xlu0 %960
    %v963 = vmul.f32 %v953, %v961
    %965 = vrot.lane.b32.xlu0 %v963, 32
    %v966 = vpop.permute.xlu0 %965
    %v968 = vadd.f32 %v958, %v966
    %v969 = vtanh.pop %v968
    %971 = vrot.lane.b32.xlu0 %v969, 64
    %v972 = vpop.permute.xlu0 %971
    %v974 = vmul.f32 %v953, %v972
    %v975 = vlaneseq
    %v976 = vshrl.u32 %v975, 7
    %v977 = vsub.s32 3, %v976
    %v978 = vrot.slane %v974, %v977
    %v979 = vsel %vm303, %v978, %v866
    %981 = vrot.lane.b32.xlu0 %v979, 32
    %v982 = vpop.permute.xlu0 %981
    %v983 = vsel %vm203, %v982, 0
    %985 = vmatprep.subr.mxu0 0.0
    %986 = vmatpush1.msra.mxu0 0.0
    %987 = vmatprep.subr.mxu0 0.0
    %988 = vmatpush1.msra.mxu0 0.0
    %989 = vmatprep.subr.mxu0 0.0
    %990 = vmatpush1.msra.mxu0 0.0
    %991 = vmatprep.subr.mxu0 0.0
    %992 = vmatpush1.msra.mxu0 0.0
    %993 = vmatprep.subr.mxu0 0.0
    %994 = vmatpush1.msra.mxu0 0.0
    %995 = vmatprep.subr.mxu0 0.0
    %996 = vmatpush1.msra.mxu0 0.0
    %997 = vmatprep.subr.mxu0 0.0
    %998 = vmatpush1.msra.mxu0 0.0
    %999 = vmatprep.subr.mxu0 0.0
    %1000 = vmatpush1.msra.mxu0 0.0
    %1001 = vmatprep.subr.mxu0 0.0
    %1002 = vmatpush1.msra.mxu0 0.0
    %1003 = vmatprep.subr.mxu0 0.0
    %1004 = vmatpush1.msra.mxu0 0.0
    %1005 = vmatprep.subr.mxu0 0.0
    %1006 = vmatpush1.msra.mxu0 0.0
    %1007 = vmatprep.subr.mxu0 0.0
    %1008 = vmatpush1.msra.mxu0 0.0
    %1009 = vmatprep.subr.mxu0 %v118
    %1010 = vmatpush1.msra.mxu0 %v117
    %1011 = vmatprep.subr.mxu0 %v116
    %1012 = vmatpush1.msra.mxu0 %v115
    %1013 = vmatprep.subr.mxu0 %v114
    %1014 = vmatpush1.msra.mxu0 %v113
    %1015 = vmatprep.subr.mxu0 %v112
    %1016 = vmatpush1.msra.mxu0 %v111
    %1017 = vmatprep.subr.mxu0 0.0
    %1018 = vmatpush2.msra.mxu0 0.0
    %1019 = vmatprep.subr.mxu0 0.0
    %1020 = vmatpush2.msra.mxu0 0.0
    %1021 = vmatprep.subr.mxu0 0.0
    %1022 = vmatpush2.msra.mxu0 0.0
    %1023 = vmatprep.subr.mxu0 0.0
    %1024 = vmatpush2.msra.mxu0 0.0
    %1025 = vmatprep.subr.mxu0 0.0
    %1026 = vmatpush2.msra.mxu0 0.0
    %1027 = vmatprep.subr.mxu0 0.0
    %1028 = vmatpush2.msra.mxu0 0.0
    %1029 = vmatprep.subr.mxu0 0.0
    %1030 = vmatpush2.msra.mxu0 0.0
    %1031 = vmatprep.subr.mxu0 0.0
    %1032 = vmatpush2.msra.mxu0 0.0
    %1033 = vmatprep.subr.mxu0 0.0
    %1034 = vmatpush2.msra.mxu0 0.0
    %1035 = vmatprep.subr.mxu0 0.0
    %1036 = vmatpush2.msra.mxu0 0.0
    %1037 = vmatprep.subr.mxu0 0.0
    %1038 = vmatpush2.msra.mxu0 0.0
    %1039 = vmatprep.subr.mxu0 0.0
    %1040 = vmatpush2.msra.mxu0 0.0
    %1041 = vmatprep.subr.mxu0 0.0
    %1042 = vmatpush2.msra.mxu0 0.0
    %1043 = vmatprep.subr.mxu0 0.0
    %1044 = vmatpush2.msra.mxu0 0.0
    %1045 = vmatprep.subr.mxu0 0.0
    %1046 = vmatpush2.msra.mxu0 0.0
    %1047 = vmatprep.subr.mxu0 0.0
    %1048 = vmatpush2.msra.mxu0 0.0
    %1049 = vmatprep.mubr.f32.mxu0 0.0
    %1050 = vmatmul.mubr.f32.gmra.mxu0 %v983
    %v1051 = vpop.f32.mrf.mxu0
    %v1052 = vadd.f32 0.0, %v1051
    %v1053 = vpop.f32.mrf.mxu0
    %v1054 = vadd.f32 0.0, %v1053
    %1055 = vdwg.mxu0
    %v1057 = vrot.slane %v1054, 1
    %v1059 = vadd.f32 %v1052, %v1057
    %v1060 = vadd.f32 %v1059, %v119
    %v1061 = vxor.u32 %v1060, 2147483648
    %v1062 = vmul.f32 %v1061, 1.442695
    %v1063 = vpow.pop %v1062
    %v1064 = vadd.f32 %v1063, 1.0
    %v1065 = vrcp.pop %v1064
    %v1066 = vmul.f32 1.0, %v1065
    %v1067 = vtanh.pop %v1060
    %v1068 = vmul.f32 %v1066, %v853
    %1070 = vrot.lane.b32.xlu0 %v1067, 64
    %v1071 = vpop.permute.xlu0 %1070
    %v1073 = vmul.f32 %v1066, %v1071
    %1075 = vrot.lane.b32.xlu0 %v1073, 32
    %v1076 = vpop.permute.xlu0 %1075
    %v1078 = vadd.f32 %v1068, %v1076
    %v1079 = vtanh.pop %v1078
    %1081 = vrot.lane.b32.xlu0 %v1079, 64
    %v1082 = vpop.permute.xlu0 %1081
    %v1084 = vmul.f32 %v1066, %v1082
    %vm1085 = vcmp.eq.s32.totalorder %v201, 3
    %v1086 = vsel %vm1085, 1, 0
    %vm1087 = vcmp.eq.s32.totalorder %v1086, 1
    %v1088 = vlaneseq
    %v1089 = vshrl.u32 %v1088, 7
    %v1090 = vsub.s32 0, %v1089
    %v1091 = vrot.slane %v1084, %v1090
    %v1092 = vsel %vm1087, %v1091, %v867
    %v1094 = vrot.slane %v974, 3
    %1095 = vrot.lane.b32.xlu0 %v1094, 32
    %v1096 = vpop.permute.xlu0 %1095
    %v1097 = vsel %vm203, %v1096, 0
    %1099 = vmatprep.subr.mxu0 0.0
    %1100 = vmatpush1.msra.mxu0 0.0
    %1101 = vmatprep.subr.mxu0 0.0
    %1102 = vmatpush1.msra.mxu0 0.0
    %1103 = vmatprep.subr.mxu0 0.0
    %1104 = vmatpush1.msra.mxu0 0.0
    %1105 = vmatprep.subr.mxu0 0.0
    %1106 = vmatpush1.msra.mxu0 0.0
    %1107 = vmatprep.subr.mxu0 0.0
    %1108 = vmatpush1.msra.mxu0 0.0
    %1109 = vmatprep.subr.mxu0 0.0
    %1110 = vmatpush1.msra.mxu0 0.0
    %1111 = vmatprep.subr.mxu0 0.0
    %1112 = vmatpush1.msra.mxu0 0.0
    %1113 = vmatprep.subr.mxu0 0.0
    %1114 = vmatpush1.msra.mxu0 0.0
    %1115 = vmatprep.subr.mxu0 0.0
    %1116 = vmatpush1.msra.mxu0 0.0
    %1117 = vmatprep.subr.mxu0 0.0
    %1118 = vmatpush1.msra.mxu0 0.0
    %1119 = vmatprep.subr.mxu0 0.0
    %1120 = vmatpush1.msra.mxu0 0.0
    %1121 = vmatprep.subr.mxu0 0.0
    %1122 = vmatpush1.msra.mxu0 0.0
    %1123 = vmatprep.subr.mxu0 0.0
    %1124 = vmatpush1.msra.mxu0 %v109
    %1125 = vmatprep.subr.mxu0 0.0
    %1126 = vmatpush1.msra.mxu0 %v108
    %1127 = vmatprep.subr.mxu0 0.0
    %1128 = vmatpush1.msra.mxu0 %v107
    %1129 = vmatprep.subr.mxu0 0.0
    %1130 = vmatpush1.msra.mxu0 %v106
    %1131 = vmatprep.subr.mxu0 0.0
    %1132 = vmatpush2.msra.mxu0 0.0
    %1133 = vmatprep.subr.mxu0 0.0
    %1134 = vmatpush2.msra.mxu0 0.0
    %1135 = vmatprep.subr.mxu0 0.0
    %1136 = vmatpush2.msra.mxu0 0.0
    %1137 = vmatprep.subr.mxu0 0.0
    %1138 = vmatpush2.msra.mxu0 0.0
    %1139 = vmatprep.subr.mxu0 0.0
    %1140 = vmatpush2.msra.mxu0 0.0
    %1141 = vmatprep.subr.mxu0 0.0
    %1142 = vmatpush2.msra.mxu0 0.0
    %1143 = vmatprep.subr.mxu0 0.0
    %1144 = vmatpush2.msra.mxu0 0.0
    %1145 = vmatprep.subr.mxu0 0.0
    %1146 = vmatpush2.msra.mxu0 0.0
    %1147 = vmatprep.subr.mxu0 0.0
    %1148 = vmatpush2.msra.mxu0 0.0
    %1149 = vmatprep.subr.mxu0 0.0
    %1150 = vmatpush2.msra.mxu0 0.0
    %1151 = vmatprep.subr.mxu0 0.0
    %1152 = vmatpush2.msra.mxu0 0.0
    %1153 = vmatprep.subr.mxu0 0.0
    %1154 = vmatpush2.msra.mxu0 0.0
    %1155 = vmatprep.subr.mxu0 0.0
    %1156 = vmatpush2.msra.mxu0 0.0
    %1157 = vmatprep.subr.mxu0 0.0
    %1158 = vmatpush2.msra.mxu0 0.0
    %1159 = vmatprep.subr.mxu0 0.0
    %1160 = vmatpush2.msra.mxu0 0.0
    %1161 = vmatprep.subr.mxu0 0.0
    %1162 = vmatpush2.msra.mxu0 0.0
    %1163 = vmatprep.mubr.f32.mxu0 0.0
    %1164 = vmatmul.mubr.f32.gmra.mxu0 %v1097
    %v1165 = vpop.f32.mrf.mxu0
    %v1166 = vadd.f32 0.0, %v1165
    %v1167 = vpop.f32.mrf.mxu0
    %1168 = vdwg.mxu0
    %v1170 = vrot.slane %v1166, 4
    %v1172 = vadd.f32 %v197, %v1170
    %v1173 = vxor.u32 %v1172, 2147483648
    %v1174 = vmul.f32 %v1173, 1.442695
    %v1175 = vpow.pop %v1174
    %v1176 = vadd.f32 %v1175, 1.0
    %v1177 = vrcp.pop %v1176
    %v1178 = vmul.f32 1.0, %v1177
    %v1179 = vtanh.pop %v1172
    %v1181 = vrot.slane %v968, 7
    %v1183 = vmul.f32 %v1178, %v1181
    %1185 = vrot.lane.b32.xlu0 %v1179, 64
    %v1186 = vpop.permute.xlu0 %1185
    %v1188 = vmul.f32 %v1178, %v1186
    %1190 = vrot.lane.b32.xlu0 %v1188, 32
    %v1191 = vpop.permute.xlu0 %1190
    %v1193 = vadd.f32 %v1183, %v1191
    %v1194 = vtanh.pop %v1193
    %1196 = vrot.lane.b32.xlu0 %v1194, 64
    %v1197 = vpop.permute.xlu0 %1196
    %v1199 = vmul.f32 %v1178, %v1197
    %v1200 = vlaneseq
    %v1201 = vshrl.u32 %v1200, 7
    %v1202 = vsub.s32 4, %v1201
    %v1203 = vrot.slane %v1199, %v1202
    %v1204 = vsel %vm303, %v1203, %v1091
    %1206 = vrot.lane.b32.xlu0 %v1204, 32
    %v1207 = vpop.permute.xlu0 %1206
    %v1208 = vsel %vm203, %v1207, 0
    %1210 = vmatprep.subr.mxu0 0.0
    %1211 = vmatpush1.msra.mxu0 0.0
    %1212 = vmatprep.subr.mxu0 0.0
    %1213 = vmatpush1.msra.mxu0 0.0
    %1214 = vmatprep.subr.mxu0 0.0
    %1215 = vmatpush1.msra.mxu0 0.0
    %1216 = vmatprep.subr.mxu0 0.0
    %1217 = vmatpush1.msra.mxu0 0.0
    %1218 = vmatprep.subr.mxu0 0.0
    %1219 = vmatpush1.msra.mxu0 0.0
    %1220 = vmatprep.subr.mxu0 0.0
    %1221 = vmatpush1.msra.mxu0 0.0
    %1222 = vmatprep.subr.mxu0 0.0
    %1223 = vmatpush1.msra.mxu0 0.0
    %1224 = vmatprep.subr.mxu0 0.0
    %1225 = vmatpush1.msra.mxu0 0.0
    %1226 = vmatprep.subr.mxu0 0.0
    %1227 = vmatpush1.msra.mxu0 0.0
    %1228 = vmatprep.subr.mxu0 0.0
    %1229 = vmatpush1.msra.mxu0 0.0
    %1230 = vmatprep.subr.mxu0 0.0
    %1231 = vmatpush1.msra.mxu0 0.0
    %1232 = vmatprep.subr.mxu0 0.0
    %1233 = vmatpush1.msra.mxu0 0.0
    %1234 = vmatprep.subr.mxu0 %v118
    %1235 = vmatpush1.msra.mxu0 %v117
    %1236 = vmatprep.subr.mxu0 %v116
    %1237 = vmatpush1.msra.mxu0 %v115
    %1238 = vmatprep.subr.mxu0 %v114
    %1239 = vmatpush1.msra.mxu0 %v113
    %1240 = vmatprep.subr.mxu0 %v112
    %1241 = vmatpush1.msra.mxu0 %v111
    %1242 = vmatprep.subr.mxu0 0.0
    %1243 = vmatpush2.msra.mxu0 0.0
    %1244 = vmatprep.subr.mxu0 0.0
    %1245 = vmatpush2.msra.mxu0 0.0
    %1246 = vmatprep.subr.mxu0 0.0
    %1247 = vmatpush2.msra.mxu0 0.0
    %1248 = vmatprep.subr.mxu0 0.0
    %1249 = vmatpush2.msra.mxu0 0.0
    %1250 = vmatprep.subr.mxu0 0.0
    %1251 = vmatpush2.msra.mxu0 0.0
    %1252 = vmatprep.subr.mxu0 0.0
    %1253 = vmatpush2.msra.mxu0 0.0
    %1254 = vmatprep.subr.mxu0 0.0
    %1255 = vmatpush2.msra.mxu0 0.0
    %1256 = vmatprep.subr.mxu0 0.0
    %1257 = vmatpush2.msra.mxu0 0.0
    %1258 = vmatprep.subr.mxu0 0.0
    %1259 = vmatpush2.msra.mxu0 0.0
    %1260 = vmatprep.subr.mxu0 0.0
    %1261 = vmatpush2.msra.mxu0 0.0
    %1262 = vmatprep.subr.mxu0 0.0
    %1263 = vmatpush2.msra.mxu0 0.0
    %1264 = vmatprep.subr.mxu0 0.0
    %1265 = vmatpush2.msra.mxu0 0.0
    %1266 = vmatprep.subr.mxu0 0.0
    %1267 = vmatpush2.msra.mxu0 0.0
    %1268 = vmatprep.subr.mxu0 0.0
    %1269 = vmatpush2.msra.mxu0 0.0
    %1270 = vmatprep.subr.mxu0 0.0
    %1271 = vmatpush2.msra.mxu0 0.0
    %1272 = vmatprep.subr.mxu0 0.0
    %1273 = vmatpush2.msra.mxu0 0.0
    %1274 = vmatprep.mubr.f32.mxu0 0.0
    %1275 = vmatmul.mubr.f32.gmra.mxu0 %v1208
    %v1276 = vpop.f32.mrf.mxu0
    %v1277 = vadd.f32 0.0, %v1276
    %v1278 = vpop.f32.mrf.mxu0
    %v1279 = vadd.f32 0.0, %v1278
    %1280 = vdwg.mxu0
    %v1282 = vrot.slane %v1279, 1
    %v1284 = vadd.f32 %v1277, %v1282
    %v1285 = vadd.f32 %v1284, %v119
    %v1286 = vxor.u32 %v1285, 2147483648
    %v1287 = vmul.f32 %v1286, 1.442695
    %v1288 = vpow.pop %v1287
    %v1289 = vadd.f32 %v1288, 1.0
    %v1290 = vrcp.pop %v1289
    %v1291 = vmul.f32 1.0, %v1290
    %v1292 = vtanh.pop %v1285
    %v1293 = vmul.f32 %v1291, %v1078
    %1295 = vrot.lane.b32.xlu0 %v1292, 64
    %v1296 = vpop.permute.xlu0 %1295
    %v1298 = vmul.f32 %v1291, %v1296
    %1300 = vrot.lane.b32.xlu0 %v1298, 32
    %v1301 = vpop.permute.xlu0 %1300
    %v1303 = vadd.f32 %v1293, %v1301
    %v1304 = vtanh.pop %v1303
    %1306 = vrot.lane.b32.xlu0 %v1304, 64
    %v1307 = vpop.permute.xlu0 %1306
    %v1309 = vmul.f32 %v1291, %v1307
    %vm1310 = vcmp.eq.s32.totalorder %v201, 4
    %v1311 = vsel %vm1310, 1, 0
    %vm1312 = vcmp.eq.s32.totalorder %v1311, 1
    %v1313 = vlaneseq
    %v1314 = vshrl.u32 %v1313, 7
    %v1315 = vsub.s32 0, %v1314
    %v1316 = vrot.slane %v1309, %v1315
    %v1317 = vsel %vm1312, %v1316, %v1092
    %v1319 = vrot.slane %v1199, 4
    %1320 = vrot.lane.b32.xlu0 %v1319, 32
    %v1321 = vpop.permute.xlu0 %1320
    %v1322 = vsel %vm203, %v1321, 0
    %1324 = vmatprep.subr.mxu0 0.0
    %1325 = vmatpush1.msra.mxu0 0.0
    %1326 = vmatprep.subr.mxu0 0.0
    %1327 = vmatpush1.msra.mxu0 0.0
    %1328 = vmatprep.subr.mxu0 0.0
    %1329 = vmatpush1.msra.mxu0 0.0
    %1330 = vmatprep.subr.mxu0 0.0
    %1331 = vmatpush1.msra.mxu0 0.0
    %1332 = vmatprep.subr.mxu0 0.0
    %1333 = vmatpush1.msra.mxu0 0.0
    %1334 = vmatprep.subr.mxu0 0.0
    %1335 = vmatpush1.msra.mxu0 0.0
    %1336 = vmatprep.subr.mxu0 0.0
    %1337 = vmatpush1.msra.mxu0 0.0
    %1338 = vmatprep.subr.mxu0 0.0
    %1339 = vmatpush1.msra.mxu0 0.0
    %1340 = vmatprep.subr.mxu0 0.0
    %1341 = vmatpush1.msra.mxu0 0.0
    %1342 = vmatprep.subr.mxu0 0.0
    %1343 = vmatpush1.msra.mxu0 0.0
    %1344 = vmatprep.subr.mxu0 0.0
    %1345 = vmatpush1.msra.mxu0 0.0
    %1346 = vmatprep.subr.mxu0 0.0
    %1347 = vmatpush1.msra.mxu0 0.0
    %1348 = vmatprep.subr.mxu0 0.0
    %1349 = vmatpush1.msra.mxu0 %v109
    %1350 = vmatprep.subr.mxu0 0.0
    %1351 = vmatpush1.msra.mxu0 %v108
    %1352 = vmatprep.subr.mxu0 0.0
    %1353 = vmatpush1.msra.mxu0 %v107
    %1354 = vmatprep.subr.mxu0 0.0
    %1355 = vmatpush1.msra.mxu0 %v106
    %1356 = vmatprep.subr.mxu0 0.0
    %1357 = vmatpush2.msra.mxu0 0.0
    %1358 = vmatprep.subr.mxu0 0.0
    %1359 = vmatpush2.msra.mxu0 0.0
    %1360 = vmatprep.subr.mxu0 0.0
    %1361 = vmatpush2.msra.mxu0 0.0
    %1362 = vmatprep.subr.mxu0 0.0
    %1363 = vmatpush2.msra.mxu0 0.0
    %1364 = vmatprep.subr.mxu0 0.0
    %1365 = vmatpush2.msra.mxu0 0.0
    %1366 = vmatprep.subr.mxu0 0.0
    %1367 = vmatpush2.msra.mxu0 0.0
    %1368 = vmatprep.subr.mxu0 0.0
    %1369 = vmatpush2.msra.mxu0 0.0
    %1370 = vmatprep.subr.mxu0 0.0
    %1371 = vmatpush2.msra.mxu0 0.0
    %1372 = vmatprep.subr.mxu0 0.0
    %1373 = vmatpush2.msra.mxu0 0.0
    %1374 = vmatprep.subr.mxu0 0.0
    %1375 = vmatpush2.msra.mxu0 0.0
    %1376 = vmatprep.subr.mxu0 0.0
    %1377 = vmatpush2.msra.mxu0 0.0
    %1378 = vmatprep.subr.mxu0 0.0
    %1379 = vmatpush2.msra.mxu0 0.0
    %1380 = vmatprep.subr.mxu0 0.0
    %1381 = vmatpush2.msra.mxu0 0.0
    %1382 = vmatprep.subr.mxu0 0.0
    %1383 = vmatpush2.msra.mxu0 0.0
    %1384 = vmatprep.subr.mxu0 0.0
    %1385 = vmatpush2.msra.mxu0 0.0
    %1386 = vmatprep.subr.mxu0 0.0
    %1387 = vmatpush2.msra.mxu0 0.0
    %1388 = vmatprep.mubr.f32.mxu0 0.0
    %1389 = vmatmul.mubr.f32.gmra.mxu0 %v1322
    %v1390 = vpop.f32.mrf.mxu0
    %v1391 = vadd.f32 0.0, %v1390
    %v1392 = vpop.f32.mrf.mxu0
    %1393 = vdwg.mxu0
    %v1395 = vrot.slane %v1391, 3
    %v1397 = vadd.f32 %v197, %v1395
    %v1398 = vxor.u32 %v1397, 2147483648
    %v1399 = vmul.f32 %v1398, 1.442695
    %v1400 = vpow.pop %v1399
    %v1401 = vadd.f32 %v1400, 1.0
    %v1402 = vrcp.pop %v1401
    %v1403 = vmul.f32 1.0, %v1402
    %v1404 = vtanh.pop %v1397
    %v1406 = vrot.slane %v1193, 7
    %v1408 = vmul.f32 %v1403, %v1406
    %1410 = vrot.lane.b32.xlu0 %v1404, 64
    %v1411 = vpop.permute.xlu0 %1410
    %v1413 = vmul.f32 %v1403, %v1411
    %1415 = vrot.lane.b32.xlu0 %v1413, 32
    %v1416 = vpop.permute.xlu0 %1415
    %v1418 = vadd.f32 %v1408, %v1416
    %v1419 = vtanh.pop %v1418
    %1421 = vrot.lane.b32.xlu0 %v1419, 64
    %v1422 = vpop.permute.xlu0 %1421
    %v1424 = vmul.f32 %v1403, %v1422
    %v1425 = vlaneseq
    %v1426 = vshrl.u32 %v1425, 7
    %v1427 = vsub.s32 5, %v1426
    %v1428 = vrot.slane %v1424, %v1427
    %v1429 = vsel %vm303, %v1428, %v1316
    %1431 = vrot.lane.b32.xlu0 %v1429, 32
    %v1432 = vpop.permute.xlu0 %1431
    %v1433 = vsel %vm203, %v1432, 0
    %1435 = vmatprep.subr.mxu0 0.0
    %1436 = vmatpush1.msra.mxu0 0.0
    %1437 = vmatprep.subr.mxu0 0.0
    %1438 = vmatpush1.msra.mxu0 0.0
    %1439 = vmatprep.subr.mxu0 0.0
    %1440 = vmatpush1.msra.mxu0 0.0
    %1441 = vmatprep.subr.mxu0 0.0
    %1442 = vmatpush1.msra.mxu0 0.0
    %1443 = vmatprep.subr.mxu0 0.0
    %1444 = vmatpush1.msra.mxu0 0.0
    %1445 = vmatprep.subr.mxu0 0.0
    %1446 = vmatpush1.msra.mxu0 0.0
    %1447 = vmatprep.subr.mxu0 0.0
    %1448 = vmatpush1.msra.mxu0 0.0
    %1449 = vmatprep.subr.mxu0 0.0
    %1450 = vmatpush1.msra.mxu0 0.0
    %1451 = vmatprep.subr.mxu0 0.0
    %1452 = vmatpush1.msra.mxu0 0.0
    %1453 = vmatprep.subr.mxu0 0.0
    %1454 = vmatpush1.msra.mxu0 0.0
    %1455 = vmatprep.subr.mxu0 0.0
    %1456 = vmatpush1.msra.mxu0 0.0
    %1457 = vmatprep.subr.mxu0 0.0
    %1458 = vmatpush1.msra.mxu0 0.0
    %1459 = vmatprep.subr.mxu0 %v118
    %1460 = vmatpush1.msra.mxu0 %v117
    %1461 = vmatprep.subr.mxu0 %v116
    %1462 = vmatpush1.msra.mxu0 %v115
    %1463 = vmatprep.subr.mxu0 %v114
    %1464 = vmatpush1.msra.mxu0 %v113
    %1465 = vmatprep.subr.mxu0 %v112
    %1466 = vmatpush1.msra.mxu0 %v111
    %1467 = vmatprep.subr.mxu0 0.0
    %1468 = vmatpush2.msra.mxu0 0.0
    %1469 = vmatprep.subr.mxu0 0.0
    %1470 = vmatpush2.msra.mxu0 0.0
    %1471 = vmatprep.subr.mxu0 0.0
    %1472 = vmatpush2.msra.mxu0 0.0
    %1473 = vmatprep.subr.mxu0 0.0
    %1474 = vmatpush2.msra.mxu0 0.0
    %1475 = vmatprep.subr.mxu0 0.0
    %1476 = vmatpush2.msra.mxu0 0.0
    %1477 = vmatprep.subr.mxu0 0.0
    %1478 = vmatpush2.msra.mxu0 0.0
    %1479 = vmatprep.subr.mxu0 0.0
    %1480 = vmatpush2.msra.mxu0 0.0
    %1481 = vmatprep.subr.mxu0 0.0
    %1482 = vmatpush2.msra.mxu0 0.0
    %1483 = vmatprep.subr.mxu0 0.0
    %1484 = vmatpush2.msra.mxu0 0.0
    %1485 = vmatprep.subr.mxu0 0.0
    %1486 = vmatpush2.msra.mxu0 0.0
    %1487 = vmatprep.subr.mxu0 0.0
    %1488 = vmatpush2.msra.mxu0 0.0
    %1489 = vmatprep.subr.mxu0 0.0
    %1490 = vmatpush2.msra.mxu0 0.0
    %1491 = vmatprep.subr.mxu0 0.0
    %1492 = vmatpush2.msra.mxu0 0.0
    %1493 = vmatprep.subr.mxu0 0.0
    %1494 = vmatpush2.msra.mxu0 0.0
    %1495 = vmatprep.subr.mxu0 0.0
    %1496 = vmatpush2.msra.mxu0 0.0
    %1497 = vmatprep.subr.mxu0 0.0
    %1498 = vmatpush2.msra.mxu0 0.0
    %1499 = vmatprep.mubr.f32.mxu0 0.0
    %1500 = vmatmul.mubr.f32.gmra.mxu0 %v1433
    %v1501 = vpop.f32.mrf.mxu0
    %v1502 = vadd.f32 0.0, %v1501
    %v1503 = vpop.f32.mrf.mxu0
    %v1504 = vadd.f32 0.0, %v1503
    %1505 = vdwg.mxu0
    %v1507 = vrot.slane %v1504, 1
    %v1509 = vadd.f32 %v1502, %v1507
    %v1510 = vadd.f32 %v1509, %v119
    %v1511 = vxor.u32 %v1510, 2147483648
    %v1512 = vmul.f32 %v1511, 1.442695
    %v1513 = vpow.pop %v1512
    %v1514 = vadd.f32 %v1513, 1.0
    %v1515 = vrcp.pop %v1514
    %v1516 = vmul.f32 1.0, %v1515
    %v1517 = vtanh.pop %v1510
    %v1518 = vmul.f32 %v1516, %v1303
    %1520 = vrot.lane.b32.xlu0 %v1517, 64
    %v1521 = vpop.permute.xlu0 %1520
    %v1523 = vmul.f32 %v1516, %v1521
    %1525 = vrot.lane.b32.xlu0 %v1523, 32
    %v1526 = vpop.permute.xlu0 %1525
    %v1528 = vadd.f32 %v1518, %v1526
    %v1529 = vtanh.pop %v1528
    %1531 = vrot.lane.b32.xlu0 %v1529, 64
    %v1532 = vpop.permute.xlu0 %1531
    %v1534 = vmul.f32 %v1516, %v1532
    %vm1535 = vcmp.eq.s32.totalorder %v201, 5
    %v1536 = vsel %vm1535, 1, 0
    %vm1537 = vcmp.eq.s32.totalorder %v1536, 1
    %v1538 = vlaneseq
    %v1539 = vshrl.u32 %v1538, 7
    %v1540 = vsub.s32 0, %v1539
    %v1541 = vrot.slane %v1534, %v1540
    %v1542 = vsel %vm1537, %v1541, %v1317
    %v1544 = vrot.slane %v1424, 5
    %1545 = vrot.lane.b32.xlu0 %v1544, 32
    %v1546 = vpop.permute.xlu0 %1545
    %v1547 = vsel %vm203, %v1546, 0
    %1549 = vmatprep.subr.mxu0 0.0
    %1550 = vmatpush1.msra.mxu0 0.0
    %1551 = vmatprep.subr.mxu0 0.0
    %1552 = vmatpush1.msra.mxu0 0.0
    %1553 = vmatprep.subr.mxu0 0.0
    %1554 = vmatpush1.msra.mxu0 0.0
    %1555 = vmatprep.subr.mxu0 0.0
    %1556 = vmatpush1.msra.mxu0 0.0
    %1557 = vmatprep.subr.mxu0 0.0
    %1558 = vmatpush1.msra.mxu0 0.0
    %1559 = vmatprep.subr.mxu0 0.0
    %1560 = vmatpush1.msra.mxu0 0.0
    %1561 = vmatprep.subr.mxu0 0.0
    %1562 = vmatpush1.msra.mxu0 0.0
    %1563 = vmatprep.subr.mxu0 0.0
    %1564 = vmatpush1.msra.mxu0 0.0
    %1565 = vmatprep.subr.mxu0 0.0
    %1566 = vmatpush1.msra.mxu0 0.0
    %1567 = vmatprep.subr.mxu0 0.0
    %1568 = vmatpush1.msra.mxu0 0.0
    %1569 = vmatprep.subr.mxu0 0.0
    %1570 = vmatpush1.msra.mxu0 0.0
    %1571 = vmatprep.subr.mxu0 0.0
    %1572 = vmatpush1.msra.mxu0 0.0
    %1573 = vmatprep.subr.mxu0 0.0
    %1574 = vmatpush1.msra.mxu0 %v109
    %1575 = vmatprep.subr.mxu0 0.0
    %1576 = vmatpush1.msra.mxu0 %v108
    %1577 = vmatprep.subr.mxu0 0.0
    %1578 = vmatpush1.msra.mxu0 %v107
    %1579 = vmatprep.subr.mxu0 0.0
    %1580 = vmatpush1.msra.mxu0 %v106
    %1581 = vmatprep.subr.mxu0 0.0
    %1582 = vmatpush2.msra.mxu0 0.0
    %1583 = vmatprep.subr.mxu0 0.0
    %1584 = vmatpush2.msra.mxu0 0.0
    %1585 = vmatprep.subr.mxu0 0.0
    %1586 = vmatpush2.msra.mxu0 0.0
    %1587 = vmatprep.subr.mxu0 0.0
    %1588 = vmatpush2.msra.mxu0 0.0
    %1589 = vmatprep.subr.mxu0 0.0
    %1590 = vmatpush2.msra.mxu0 0.0
    %1591 = vmatprep.subr.mxu0 0.0
    %1592 = vmatpush2.msra.mxu0 0.0
    %1593 = vmatprep.subr.mxu0 0.0
    %1594 = vmatpush2.msra.mxu0 0.0
    %1595 = vmatprep.subr.mxu0 0.0
    %1596 = vmatpush2.msra.mxu0 0.0
    %1597 = vmatprep.subr.mxu0 0.0
    %1598 = vmatpush2.msra.mxu0 0.0
    %1599 = vmatprep.subr.mxu0 0.0
    %1600 = vmatpush2.msra.mxu0 0.0
    %1601 = vmatprep.subr.mxu0 0.0
    %1602 = vmatpush2.msra.mxu0 0.0
    %1603 = vmatprep.subr.mxu0 0.0
    %1604 = vmatpush2.msra.mxu0 0.0
    %1605 = vmatprep.subr.mxu0 0.0
    %1606 = vmatpush2.msra.mxu0 0.0
    %1607 = vmatprep.subr.mxu0 0.0
    %1608 = vmatpush2.msra.mxu0 0.0
    %1609 = vmatprep.subr.mxu0 0.0
    %1610 = vmatpush2.msra.mxu0 0.0
    %1611 = vmatprep.subr.mxu0 0.0
    %1612 = vmatpush2.msra.mxu0 0.0
    %1613 = vmatprep.mubr.f32.mxu0 0.0
    %1614 = vmatmul.mubr.f32.gmra.mxu0 %v1547
    %v1615 = vpop.f32.mrf.mxu0
    %v1616 = vadd.f32 0.0, %v1615
    %v1617 = vpop.f32.mrf.mxu0
    %1618 = vdwg.mxu0
    %v1620 = vrot.slane %v1616, 2
    %v1622 = vadd.f32 %v197, %v1620
    %v1623 = vxor.u32 %v1622, 2147483648
    %v1624 = vmul.f32 %v1623, 1.442695
    %v1625 = vpow.pop %v1624
    %v1626 = vadd.f32 %v1625, 1.0
    %v1627 = vrcp.pop %v1626
    %v1628 = vmul.f32 1.0, %v1627
    %v1629 = vtanh.pop %v1622
    %v1631 = vrot.slane %v1418, 7
    %v1633 = vmul.f32 %v1628, %v1631
    %1635 = vrot.lane.b32.xlu0 %v1629, 64
    %v1636 = vpop.permute.xlu0 %1635
    %v1638 = vmul.f32 %v1628, %v1636
    %1640 = vrot.lane.b32.xlu0 %v1638, 32
    %v1641 = vpop.permute.xlu0 %1640
    %v1643 = vadd.f32 %v1633, %v1641
    %v1644 = vtanh.pop %v1643
    %1646 = vrot.lane.b32.xlu0 %v1644, 64
    %v1647 = vpop.permute.xlu0 %1646
    %v1649 = vmul.f32 %v1628, %v1647
    %v1650 = vlaneseq
    %v1651 = vshrl.u32 %v1650, 7
    %v1652 = vsub.s32 6, %v1651
    %v1653 = vrot.slane %v1649, %v1652
    %v1654 = vsel %vm303, %v1653, %v1541
    %1656 = vrot.lane.b32.xlu0 %v1654, 32
    %v1657 = vpop.permute.xlu0 %1656
    %v1658 = vsel %vm203, %v1657, 0
    %1660 = vmatprep.subr.mxu0 0.0
    %1661 = vmatpush1.msra.mxu0 0.0
    %1662 = vmatprep.subr.mxu0 0.0
    %1663 = vmatpush1.msra.mxu0 0.0
    %1664 = vmatprep.subr.mxu0 0.0
    %1665 = vmatpush1.msra.mxu0 0.0
    %1666 = vmatprep.subr.mxu0 0.0
    %1667 = vmatpush1.msra.mxu0 0.0
    %1668 = vmatprep.subr.mxu0 0.0
    %1669 = vmatpush1.msra.mxu0 0.0
    %1670 = vmatprep.subr.mxu0 0.0
    %1671 = vmatpush1.msra.mxu0 0.0
    %1672 = vmatprep.subr.mxu0 0.0
    %1673 = vmatpush1.msra.mxu0 0.0
    %1674 = vmatprep.subr.mxu0 0.0
    %1675 = vmatpush1.msra.mxu0 0.0
    %1676 = vmatprep.subr.mxu0 0.0
    %1677 = vmatpush1.msra.mxu0 0.0
    %1678 = vmatprep.subr.mxu0 0.0
    %1679 = vmatpush1.msra.mxu0 0.0
    %1680 = vmatprep.subr.mxu0 0.0
    %1681 = vmatpush1.msra.mxu0 0.0
    %1682 = vmatprep.subr.mxu0 0.0
    %1683 = vmatpush1.msra.mxu0 0.0
    %1684 = vmatprep.subr.mxu0 %v118
    %1685 = vmatpush1.msra.mxu0 %v117
    %1686 = vmatprep.subr.mxu0 %v116
    %1687 = vmatpush1.msra.mxu0 %v115
    %1688 = vmatprep.subr.mxu0 %v114
    %1689 = vmatpush1.msra.mxu0 %v113
    %1690 = vmatprep.subr.mxu0 %v112
    %1691 = vmatpush1.msra.mxu0 %v111
    %1692 = vmatprep.subr.mxu0 0.0
    %1693 = vmatpush2.msra.mxu0 0.0
    %1694 = vmatprep.subr.mxu0 0.0
    %1695 = vmatpush2.msra.mxu0 0.0
    %1696 = vmatprep.subr.mxu0 0.0
    %1697 = vmatpush2.msra.mxu0 0.0
    %1698 = vmatprep.subr.mxu0 0.0
    %1699 = vmatpush2.msra.mxu0 0.0
    %1700 = vmatprep.subr.mxu0 0.0
    %1701 = vmatpush2.msra.mxu0 0.0
    %1702 = vmatprep.subr.mxu0 0.0
    %1703 = vmatpush2.msra.mxu0 0.0
    %1704 = vmatprep.subr.mxu0 0.0
    %1705 = vmatpush2.msra.mxu0 0.0
    %1706 = vmatprep.subr.mxu0 0.0
    %1707 = vmatpush2.msra.mxu0 0.0
    %1708 = vmatprep.subr.mxu0 0.0
    %1709 = vmatpush2.msra.mxu0 0.0
    %1710 = vmatprep.subr.mxu0 0.0
    %1711 = vmatpush2.msra.mxu0 0.0
    %1712 = vmatprep.subr.mxu0 0.0
    %1713 = vmatpush2.msra.mxu0 0.0
    %1714 = vmatprep.subr.mxu0 0.0
    %1715 = vmatpush2.msra.mxu0 0.0
    %1716 = vmatprep.subr.mxu0 0.0
    %1717 = vmatpush2.msra.mxu0 0.0
    %1718 = vmatprep.subr.mxu0 0.0
    %1719 = vmatpush2.msra.mxu0 0.0
    %1720 = vmatprep.subr.mxu0 0.0
    %1721 = vmatpush2.msra.mxu0 0.0
    %1722 = vmatprep.subr.mxu0 0.0
    %1723 = vmatpush2.msra.mxu0 0.0
    %1724 = vmatprep.mubr.f32.mxu0 0.0
    %1725 = vmatmul.mubr.f32.gmra.mxu0 %v1658
    %v1726 = vpop.f32.mrf.mxu0
    %v1727 = vadd.f32 0.0, %v1726
    %v1728 = vpop.f32.mrf.mxu0
    %v1729 = vadd.f32 0.0, %v1728
    %1730 = vdwg.mxu0
    %v1732 = vrot.slane %v1729, 1
    %v1734 = vadd.f32 %v1727, %v1732
    %v1735 = vadd.f32 %v1734, %v119
    %v1736 = vxor.u32 %v1735, 2147483648
    %v1737 = vmul.f32 %v1736, 1.442695
    %v1738 = vpow.pop %v1737
    %v1739 = vadd.f32 %v1738, 1.0
    %v1740 = vrcp.pop %v1739
    %v1741 = vmul.f32 1.0, %v1740
    %v1742 = vtanh.pop %v1735
    %v1743 = vmul.f32 %v1741, %v1528
    %1745 = vrot.lane.b32.xlu0 %v1742, 64
    %v1746 = vpop.permute.xlu0 %1745
    %v1748 = vmul.f32 %v1741, %v1746
    %1750 = vrot.lane.b32.xlu0 %v1748, 32
    %v1751 = vpop.permute.xlu0 %1750
    %v1753 = vadd.f32 %v1743, %v1751
    %v1754 = vtanh.pop %v1753
    %1756 = vrot.lane.b32.xlu0 %v1754, 64
    %v1757 = vpop.permute.xlu0 %1756
    %v1759 = vmul.f32 %v1741, %v1757
    %vm1760 = vcmp.eq.s32.totalorder %v201, 6
    %v1761 = vsel %vm1760, 1, 0
    %vm1762 = vcmp.eq.s32.totalorder %v1761, 1
    %v1763 = vlaneseq
    %v1764 = vshrl.u32 %v1763, 7
    %v1765 = vsub.s32 0, %v1764
    %v1766 = vrot.slane %v1759, %v1765
    %v1767 = vsel %vm1762, %v1766, %v1542
    %v1769 = vrot.slane %v1649, 6
    %1770 = vrot.lane.b32.xlu0 %v1769, 32
    %v1771 = vpop.permute.xlu0 %1770
    %v1772 = vsel %vm203, %v1771, 0
    %1774 = vmatprep.subr.mxu0 0.0
    %1775 = vmatpush1.msra.mxu0 0.0
    %1776 = vmatprep.subr.mxu0 0.0
    %1777 = vmatpush1.msra.mxu0 0.0
    %1778 = vmatprep.subr.mxu0 0.0
    %1779 = vmatpush1.msra.mxu0 0.0
    %1780 = vmatprep.subr.mxu0 0.0
    %1781 = vmatpush1.msra.mxu0 0.0
    %1782 = vmatprep.subr.mxu0 0.0
    %1783 = vmatpush1.msra.mxu0 0.0
    %1784 = vmatprep.subr.mxu0 0.0
    %1785 = vmatpush1.msra.mxu0 0.0
    %1786 = vmatprep.subr.mxu0 0.0
    %1787 = vmatpush1.msra.mxu0 0.0
    %1788 = vmatprep.subr.mxu0 0.0
    %1789 = vmatpush1.msra.mxu0 0.0
    %1790 = vmatprep.subr.mxu0 0.0
    %1791 = vmatpush1.msra.mxu0 0.0
    %1792 = vmatprep.subr.mxu0 0.0
    %1793 = vmatpush1.msra.mxu0 0.0
    %1794 = vmatprep.subr.mxu0 0.0
    %1795 = vmatpush1.msra.mxu0 0.0
    %1796 = vmatprep.subr.mxu0 0.0
    %1797 = vmatpush1.msra.mxu0 0.0
    %1798 = vmatprep.subr.mxu0 0.0
    %1799 = vmatpush1.msra.mxu0 %v109
    %1800 = vmatprep.subr.mxu0 0.0
    %1801 = vmatpush1.msra.mxu0 %v108
    %1802 = vmatprep.subr.mxu0 0.0
    %1803 = vmatpush1.msra.mxu0 %v107
    %1804 = vmatprep.subr.mxu0 0.0
    %1805 = vmatpush1.msra.mxu0 %v106
    %1806 = vmatprep.subr.mxu0 0.0
    %1807 = vmatpush2.msra.mxu0 0.0
    %1808 = vmatprep.subr.mxu0 0.0
    %1809 = vmatpush2.msra.mxu0 0.0
    %1810 = vmatprep.subr.mxu0 0.0
    %1811 = vmatpush2.msra.mxu0 0.0
    %1812 = vmatprep.subr.mxu0 0.0
    %1813 = vmatpush2.msra.mxu0 0.0
    %1814 = vmatprep.subr.mxu0 0.0
    %1815 = vmatpush2.msra.mxu0 0.0
    %1816 = vmatprep.subr.mxu0 0.0
    %1817 = vmatpush2.msra.mxu0 0.0
    %1818 = vmatprep.subr.mxu0 0.0
    %1819 = vmatpush2.msra.mxu0 0.0
    %1820 = vmatprep.subr.mxu0 0.0
    %1821 = vmatpush2.msra.mxu0 0.0
    %1822 = vmatprep.subr.mxu0 0.0
    %1823 = vmatpush2.msra.mxu0 0.0
    %1824 = vmatprep.subr.mxu0 0.0
    %1825 = vmatpush2.msra.mxu0 0.0
    %1826 = vmatprep.subr.mxu0 0.0
    %1827 = vmatpush2.msra.mxu0 0.0
    %1828 = vmatprep.subr.mxu0 0.0
    %1829 = vmatpush2.msra.mxu0 0.0
    %1830 = vmatprep.subr.mxu0 0.0
    %1831 = vmatpush2.msra.mxu0 0.0
    %1832 = vmatprep.subr.mxu0 0.0
    %1833 = vmatpush2.msra.mxu0 0.0
    %1834 = vmatprep.subr.mxu0 0.0
    %1835 = vmatpush2.msra.mxu0 0.0
    %1836 = vmatprep.subr.mxu0 0.0
    %1837 = vmatpush2.msra.mxu0 0.0
    %1838 = vmatprep.mubr.f32.mxu0 0.0
    %1839 = vmatmul.mubr.f32.gmra.mxu0 %v1772
    %v1840 = vpop.f32.mrf.mxu0
    %v1841 = vadd.f32 0.0, %v1840
    %v1842 = vpop.f32.mrf.mxu0
    %1843 = vdwg.mxu0
    %v1845 = vrot.slane %v1841, 1
    %v1847 = vadd.f32 %v197, %v1845
    %v1848 = vxor.u32 %v1847, 2147483648
    %v1849 = vmul.f32 %v1848, 1.442695
    %v1850 = vpow.pop %v1849
    %v1851 = vadd.f32 %v1850, 1.0
    %v1852 = vrcp.pop %v1851
    %v1853 = vmul.f32 1.0, %v1852
    %v1854 = vtanh.pop %v1847
    %v1856 = vrot.slane %v1643, 7
    %v1858 = vmul.f32 %v1853, %v1856
    %1860 = vrot.lane.b32.xlu0 %v1854, 64
    %v1861 = vpop.permute.xlu0 %1860
    %v1863 = vmul.f32 %v1853, %v1861
    %1865 = vrot.lane.b32.xlu0 %v1863, 32
    %v1866 = vpop.permute.xlu0 %1865
    %v1868 = vadd.f32 %v1858, %v1866
    %v1869 = vtanh.pop %v1868
    %1871 = vrot.lane.b32.xlu0 %v1869, 64
    %v1872 = vpop.permute.xlu0 %1871
    %v1874 = vmul.f32 %v1853, %v1872
    %v1875 = vlaneseq
    %v1876 = vshrl.u32 %v1875, 7
    %v1877 = vsub.s32 7, %v1876
    %v1878 = vrot.slane %v1874, %v1877
    %v1879 = vsel %vm303, %v1878, %v1766
    %1881 = vrot.lane.b32.xlu0 %v1879, 32
    %v1882 = vpop.permute.xlu0 %1881
    %v1883 = vsel %vm203, %v1882, 0
    %1885 = vmatprep.subr.mxu0 0.0
    %1886 = vmatpush1.msra.mxu0 0.0
    %1887 = vmatprep.subr.mxu0 0.0
    %1888 = vmatpush1.msra.mxu0 0.0
    %1889 = vmatprep.subr.mxu0 0.0
    %1890 = vmatpush1.msra.mxu0 0.0
    %1891 = vmatprep.subr.mxu0 0.0
    %1892 = vmatpush1.msra.mxu0 0.0
    %1893 = vmatprep.subr.mxu0 0.0
    %1894 = vmatpush1.msra.mxu0 0.0
    %1895 = vmatprep.subr.mxu0 0.0
    %1896 = vmatpush1.msra.mxu0 0.0
    %1897 = vmatprep.subr.mxu0 0.0
    %1898 = vmatpush1.msra.mxu0 0.0
    %1899 = vmatprep.subr.mxu0 0.0
    %1900 = vmatpush1.msra.mxu0 0.0
    %1901 = vmatprep.subr.mxu0 0.0
    %1902 = vmatpush1.msra.mxu0 0.0
    %1903 = vmatprep.subr.mxu0 0.0
    %1904 = vmatpush1.msra.mxu0 0.0
    %1905 = vmatprep.subr.mxu0 0.0
    %1906 = vmatpush1.msra.mxu0 0.0
    %1907 = vmatprep.subr.mxu0 0.0
    %1908 = vmatpush1.msra.mxu0 0.0
    %1909 = vmatprep.subr.mxu0 %v118
    %1910 = vmatpush1.msra.mxu0 %v117
    %1911 = vmatprep.subr.mxu0 %v116
    %1912 = vmatpush1.msra.mxu0 %v115
    %1913 = vmatprep.subr.mxu0 %v114
    %1914 = vmatpush1.msra.mxu0 %v113
    %1915 = vmatprep.subr.mxu0 %v112
    %1916 = vmatpush1.msra.mxu0 %v111
    %1917 = vmatprep.subr.mxu0 0.0
    %1918 = vmatpush2.msra.mxu0 0.0
    %1919 = vmatprep.subr.mxu0 0.0
    %1920 = vmatpush2.msra.mxu0 0.0
    %1921 = vmatprep.subr.mxu0 0.0
    %1922 = vmatpush2.msra.mxu0 0.0
    %1923 = vmatprep.subr.mxu0 0.0
    %1924 = vmatpush2.msra.mxu0 0.0
    %1925 = vmatprep.subr.mxu0 0.0
    %1926 = vmatpush2.msra.mxu0 0.0
    %1927 = vmatprep.subr.mxu0 0.0
    %1928 = vmatpush2.msra.mxu0 0.0
    %1929 = vmatprep.subr.mxu0 0.0
    %1930 = vmatpush2.msra.mxu0 0.0
    %1931 = vmatprep.subr.mxu0 0.0
    %1932 = vmatpush2.msra.mxu0 0.0
    %1933 = vmatprep.subr.mxu0 0.0
    %1934 = vmatpush2.msra.mxu0 0.0
    %1935 = vmatprep.subr.mxu0 0.0
    %1936 = vmatpush2.msra.mxu0 0.0
    %1937 = vmatprep.subr.mxu0 0.0
    %1938 = vmatpush2.msra.mxu0 0.0
    %1939 = vmatprep.subr.mxu0 0.0
    %1940 = vmatpush2.msra.mxu0 0.0
    %1941 = vmatprep.subr.mxu0 0.0
    %1942 = vmatpush2.msra.mxu0 0.0
    %1943 = vmatprep.subr.mxu0 0.0
    %1944 = vmatpush2.msra.mxu0 0.0
    %1945 = vmatprep.subr.mxu0 0.0
    %1946 = vmatpush2.msra.mxu0 0.0
    %1947 = vmatprep.subr.mxu0 0.0
    %1948 = vmatpush2.msra.mxu0 0.0
    %1949 = vmatprep.mubr.f32.mxu0 0.0
    %1950 = vmatmul.mubr.f32.gmra.mxu0 %v1883
    %v1951 = vpop.f32.mrf.mxu0
    %v1952 = vadd.f32 0.0, %v1951
    %v1953 = vpop.f32.mrf.mxu0
    %v1954 = vadd.f32 0.0, %v1953
    %1955 = vdwg.mxu0
    %v1957 = vrot.slane %v1954, 1
    %v1959 = vadd.f32 %v1952, %v1957
    %v1960 = vadd.f32 %v1959, %v119
    %v1961 = vxor.u32 %v1960, 2147483648
    %v1962 = vmul.f32 %v1961, 1.442695
    %v1963 = vpow.pop %v1962
    %v1964 = vadd.f32 %v1963, 1.0
    %v1965 = vrcp.pop %v1964
    %v1966 = vmul.f32 1.0, %v1965
    %v1967 = vtanh.pop %v1960
    %v1968 = vmul.f32 %v1966, %v1753
    %1970 = vrot.lane.b32.xlu0 %v1967, 64
    %v1971 = vpop.permute.xlu0 %1970
    %v1973 = vmul.f32 %v1966, %v1971
    %1975 = vrot.lane.b32.xlu0 %v1973, 32
    %v1976 = vpop.permute.xlu0 %1975
    %v1978 = vadd.f32 %v1968, %v1976
    %v1979 = vtanh.pop %v1978
    %1981 = vrot.lane.b32.xlu0 %v1979, 64
    %v1982 = vpop.permute.xlu0 %1981
    %v1984 = vmul.f32 %v1966, %v1982
    %vm1985 = vcmp.eq.s32.totalorder %v201, 7
    %v1986 = vsel %vm1985, 1, 0
    %vm1987 = vcmp.eq.s32.totalorder %v1986, 1
    %v1988 = vlaneseq
    %v1989 = vshrl.u32 %v1988, 7
    %v1990 = vsub.s32 0, %v1989
    %v1991 = vrot.slane %v1984, %v1990
    %v1992 = vsel %vm1987, %v1991, %v1767
    %v1993 = vld [vmem:[#allocation7] sm:$0xff]
    %v1994 = vld [vmem:[#allocation7 + $0x8] sm:$0xff]
    %v1995 = vld [vmem:[#allocation7 + $0x10] sm:$0xff]
    %v1996 = vld [vmem:[#allocation7 + $0x18] sm:$0xff]
    %v1997 = vld [vmem:[%s7] sm:$0x1]
    %v1999 = vlaneseq
    %v2000 = vshrl.u32 %v1999, 7
    %v2001 = vsub.s32 0, %v2000
    %v2002 = vrot.slane %v1997, %v2001
    %2005 = vrot.lane.b32.xlu0 %v1992, 32
    %v2006 = vpop.permute.xlu0 %2005
    %v2007 = vsel %vm203, %v2006, 0
    %2009 = vmatprep.subr.mxu0 0.0
    %2010 = vmatpush1.msra.mxu0 0.0
    %2011 = vmatprep.subr.mxu0 0.0
    %2012 = vmatpush1.msra.mxu0 0.0
    %2013 = vmatprep.subr.mxu0 0.0
    %2014 = vmatpush1.msra.mxu0 0.0
    %2015 = vmatprep.subr.mxu0 0.0
    %2016 = vmatpush1.msra.mxu0 0.0
    %2017 = vmatprep.subr.mxu0 0.0
    %2018 = vmatpush1.msra.mxu0 0.0
    %2019 = vmatprep.subr.mxu0 0.0
    %2020 = vmatpush1.msra.mxu0 0.0
    %2021 = vmatprep.subr.mxu0 0.0
    %2022 = vmatpush1.msra.mxu0 0.0
    %2023 = vmatprep.subr.mxu0 0.0
    %2024 = vmatpush1.msra.mxu0 0.0
    %2025 = vmatprep.subr.mxu0 0.0
    %2026 = vmatpush1.msra.mxu0 0.0
    %2027 = vmatprep.subr.mxu0 0.0
    %2028 = vmatpush1.msra.mxu0 0.0
    %2029 = vmatprep.subr.mxu0 0.0
    %2030 = vmatpush1.msra.mxu0 0.0
    %2031 = vmatprep.subr.mxu0 0.0
    %2032 = vmatpush1.msra.mxu0 0.0
    %2033 = vmatprep.subr.mxu0 0.0
    %2034 = vmatpush1.msra.mxu0 %v1996
    %2035 = vmatprep.subr.mxu0 0.0
    %2036 = vmatpush1.msra.mxu0 %v1995
    %2037 = vmatprep.subr.mxu0 0.0
    %2038 = vmatpush1.msra.mxu0 %v1994
    %2039 = vmatprep.subr.mxu0 0.0
    %2040 = vmatpush1.msra.mxu0 %v1993
    %2041 = vmatprep.subr.mxu0 0.0
    %2042 = vmatpush2.msra.mxu0 0.0
    %2043 = vmatprep.subr.mxu0 0.0
    %2044 = vmatpush2.msra.mxu0 0.0
    %2045 = vmatprep.subr.mxu0 0.0
    %2046 = vmatpush2.msra.mxu0 0.0
    %2047 = vmatprep.subr.mxu0 0.0
    %2048 = vmatpush2.msra.mxu0 0.0
    %2049 = vmatprep.subr.mxu0 0.0
    %2050 = vmatpush2.msra.mxu0 0.0
    %2051 = vmatprep.subr.mxu0 0.0
    %2052 = vmatpush2.msra.mxu0 0.0
    %2053 = vmatprep.subr.mxu0 0.0
    %2054 = vmatpush2.msra.mxu0 0.0
    %2055 = vmatprep.subr.mxu0 0.0
    %2056 = vmatpush2.msra.mxu0 0.0
    %2057 = vmatprep.subr.mxu0 0.0
    %2058 = vmatpush2.msra.mxu0 0.0
    %2059 = vmatprep.subr.mxu0 0.0
    %2060 = vmatpush2.msra.mxu0 0.0
    %2061 = vmatprep.subr.mxu0 0.0
    %2062 = vmatpush2.msra.mxu0 0.0
    %2063 = vmatprep.subr.mxu0 0.0
    %2064 = vmatpush2.msra.mxu0 0.0
    %2065 = vmatprep.subr.mxu0 0.0
    %2066 = vmatpush2.msra.mxu0 0.0
    %2067 = vmatprep.subr.mxu0 0.0
    %2068 = vmatpush2.msra.mxu0 0.0
    %2069 = vmatprep.subr.mxu0 0.0
    %2070 = vmatpush2.msra.mxu0 0.0
    %2071 = vmatprep.subr.mxu0 0.0
    %2072 = vmatpush2.msra.mxu0 0.0
    %2073 = vmatprep.mubr.f32.mxu0 0.0
    %2074 = vmatmul.mubr.f32.gmra.mxu0 %v2007
    %v2075 = vpop.f32.mrf.mxu0
    %v2076 = vadd.f32 %v2002, %v2075
    %v2077 = vpop.f32.mrf.mxu0
    %2078 = vdwg.mxu0
    %v2079 = vmax.f32 %v2076, 0.0
    %v2080 = vld [vmem:[#allocation8] sm:$0xff]
    %v2081 = vld [vmem:[#allocation8 + $0x8] sm:$0xff]
    %v2082 = vld [vmem:[#allocation8 + $0x10] sm:$0xff]
    %v2083 = vld [vmem:[#allocation8 + $0x18] sm:$0xff]
    %v2084 = vld [vmem:[%s9] sm:$0x1]
    %v2086 = vlaneseq
    %v2087 = vshrl.u32 %v2086, 7
    %v2088 = vsub.s32 0, %v2087
    %v2089 = vrot.slane %v2084, %v2088
    %v2092 = vsel %vm203, %v2079, 0
    %2094 = vmatprep.subr.mxu0 0.0
    %2095 = vmatpush1.msra.mxu0 0.0
    %2096 = vmatprep.subr.mxu0 0.0
    %2097 = vmatpush1.msra.mxu0 0.0
    %2098 = vmatprep.subr.mxu0 0.0
    %2099 = vmatpush1.msra.mxu0 0.0
    %2100 = vmatprep.subr.mxu0 0.0
    %2101 = vmatpush1.msra.mxu0 0.0
    %2102 = vmatprep.subr.mxu0 0.0
    %2103 = vmatpush1.msra.mxu0 0.0
    %2104 = vmatprep.subr.mxu0 0.0
    %2105 = vmatpush1.msra.mxu0 0.0
    %2106 = vmatprep.subr.mxu0 0.0
    %2107 = vmatpush1.msra.mxu0 0.0
    %2108 = vmatprep.subr.mxu0 0.0
    %2109 = vmatpush1.msra.mxu0 0.0
    %2110 = vmatprep.subr.mxu0 0.0
    %2111 = vmatpush1.msra.mxu0 0.0
    %2112 = vmatprep.subr.mxu0 0.0
    %2113 = vmatpush1.msra.mxu0 0.0
    %2114 = vmatprep.subr.mxu0 0.0
    %2115 = vmatpush1.msra.mxu0 0.0
    %2116 = vmatprep.subr.mxu0 0.0
    %2117 = vmatpush1.msra.mxu0 0.0
    %2118 = vmatprep.subr.mxu0 0.0
    %2119 = vmatpush1.msra.mxu0 %v2083
    %2120 = vmatprep.subr.mxu0 0.0
    %2121 = vmatpush1.msra.mxu0 %v2082
    %2122 = vmatprep.subr.mxu0 0.0
    %2123 = vmatpush1.msra.mxu0 %v2081
    %2124 = vmatprep.subr.mxu0 0.0
    %2125 = vmatpush1.msra.mxu0 %v2080
    %2126 = vmatprep.subr.mxu0 0.0
    %2127 = vmatpush2.msra.mxu0 0.0
    %2128 = vmatprep.subr.mxu0 0.0
    %2129 = vmatpush2.msra.mxu0 0.0
    %2130 = vmatprep.subr.mxu0 0.0
    %2131 = vmatpush2.msra.mxu0 0.0
    %2132 = vmatprep.subr.mxu0 0.0
    %2133 = vmatpush2.msra.mxu0 0.0
    %2134 = vmatprep.subr.mxu0 0.0
    %2135 = vmatpush2.msra.mxu0 0.0
    %2136 = vmatprep.subr.mxu0 0.0
    %2137 = vmatpush2.msra.mxu0 0.0
    %2138 = vmatprep.subr.mxu0 0.0
    %2139 = vmatpush2.msra.mxu0 0.0
    %2140 = vmatprep.subr.mxu0 0.0
    %2141 = vmatpush2.msra.mxu0 0.0
    %2142 = vmatprep.subr.mxu0 0.0
    %2143 = vmatpush2.msra.mxu0 0.0
    %2144 = vmatprep.subr.mxu0 0.0
    %2145 = vmatpush2.msra.mxu0 0.0
    %2146 = vmatprep.subr.mxu0 0.0
    %2147 = vmatpush2.msra.mxu0 0.0
    %2148 = vmatprep.subr.mxu0 0.0
    %2149 = vmatpush2.msra.mxu0 0.0
    %2150 = vmatprep.subr.mxu0 0.0
    %2151 = vmatpush2.msra.mxu0 0.0
    %2152 = vmatprep.subr.mxu0 0.0
    %2153 = vmatpush2.msra.mxu0 0.0
    %2154 = vmatprep.subr.mxu0 0.0
    %2155 = vmatpush2.msra.mxu0 0.0
    %2156 = vmatprep.subr.mxu0 0.0
    %2157 = vmatpush2.msra.mxu0 0.0
    %2158 = vmatprep.mubr.f32.mxu0 0.0
    %2159 = vmatmul.mubr.f32.gmra.mxu0 %v2092
    %v2160 = vpop.f32.mrf.mxu0
    %v2161 = vadd.f32 %v2089, %v2160
    %v2162 = vpop.f32.mrf.mxu0
    %2163 = vdwg.mxu0
    %v2164 = vmax.f32 %v2161, 0.0
    %v2165 = vld [vmem:[%s10] sm:$0xff]
    %v2166 = vld [vmem:[%s10 + $0x8] sm:$0xff]
    %v2167 = vld [vmem:[%s10 + $0x10] sm:$0xff]
    %v2168 = vld [vmem:[%s10 + $0x18] sm:$0xff]
    %v2169 = vld [vmem:[%s11] sm:$0x1]
    %v2171 = vlaneseq
    %v2172 = vshrl.u32 %v2171, 7
    %v2173 = vsub.s32 0, %v2172
    %v2174 = vrot.slane %v2169, %v2173
    %v2177 = vsel %vm203, %v2164, 0
    %2179 = vmatprep.subr.mxu0 0.0
    %2180 = vmatpush1.msra.mxu0 0.0
    %2181 = vmatprep.subr.mxu0 0.0
    %2182 = vmatpush1.msra.mxu0 0.0
    %2183 = vmatprep.subr.mxu0 0.0
    %2184 = vmatpush1.msra.mxu0 0.0
    %2185 = vmatprep.subr.mxu0 0.0
    %2186 = vmatpush1.msra.mxu0 0.0
    %2187 = vmatprep.subr.mxu0 0.0
    %2188 = vmatpush1.msra.mxu0 0.0
    %2189 = vmatprep.subr.mxu0 0.0
    %2190 = vmatpush1.msra.mxu0 0.0
    %2191 = vmatprep.subr.mxu0 0.0
    %2192 = vmatpush1.msra.mxu0 0.0
    %2193 = vmatprep.subr.mxu0 0.0
    %2194 = vmatpush1.msra.mxu0 0.0
    %2195 = vmatprep.subr.mxu0 0.0
    %2196 = vmatpush1.msra.mxu0 0.0
    %2197 = vmatprep.subr.mxu0 0.0
    %2198 = vmatpush1.msra.mxu0 0.0
    %2199 = vmatprep.subr.mxu0 0.0
    %2200 = vmatpush1.msra.mxu0 0.0
    %2201 = vmatprep.subr.mxu0 0.0
    %2202 = vmatpush1.msra.mxu0 0.0
    %2203 = vmatprep.subr.mxu0 0.0
    %2204 = vmatpush1.msra.mxu0 %v2168
    %2205 = vmatprep.subr.mxu0 0.0
    %2206 = vmatpush1.msra.mxu0 %v2167
    %2207 = vmatprep.subr.mxu0 0.0
    %2208 = vmatpush1.msra.mxu0 %v2166
    %2209 = vmatprep.subr.mxu0 0.0
    %2210 = vmatpush1.msra.mxu0 %v2165
    %2211 = vmatprep.subr.mxu0 0.0
    %2212 = vmatpush2.msra.mxu0 0.0
    %2213 = vmatprep.subr.mxu0 0.0
    %2214 = vmatpush2.msra.mxu0 0.0
    %2215 = vmatprep.subr.mxu0 0.0
    %2216 = vmatpush2.msra.mxu0 0.0
    %2217 = vmatprep.subr.mxu0 0.0
    %2218 = vmatpush2.msra.mxu0 0.0
    %2219 = vmatprep.subr.mxu0 0.0
    %2220 = vmatpush2.msra.mxu0 0.0
    %2221 = vmatprep.subr.mxu0 0.0
    %2222 = vmatpush2.msra.mxu0 0.0
    %2223 = vmatprep.subr.mxu0 0.0
    %2224 = vmatpush2.msra.mxu0 0.0
    %2225 = vmatprep.subr.mxu0 0.0
    %2226 = vmatpush2.msra.mxu0 0.0
    %2227 = vmatprep.subr.mxu0 0.0
    %2228 = vmatpush2.msra.mxu0 0.0
    %2229 = vmatprep.subr.mxu0 0.0
    %2230 = vmatpush2.msra.mxu0 0.0
    %2231 = vmatprep.subr.mxu0 0.0
    %2232 = vmatpush2.msra.mxu0 0.0
    %2233 = vmatprep.subr.mxu0 0.0
    %2234 = vmatpush2.msra.mxu0 0.0
    %2235 = vmatprep.subr.mxu0 0.0
    %2236 = vmatpush2.msra.mxu0 0.0
    %2237 = vmatprep.subr.mxu0 0.0
    %2238 = vmatpush2.msra.mxu0 0.0
    %2239 = vmatprep.subr.mxu0 0.0
    %2240 = vmatpush2.msra.mxu0 0.0
    %2241 = vmatprep.subr.mxu0 0.0
    %2242 = vmatpush2.msra.mxu0 0.0
    %2243 = vmatprep.mubr.f32.mxu0 0.0
    %2244 = vmatmul.mubr.f32.gmra.mxu0 %v2177
    %v2245 = vpop.f32.mrf.mxu0
    %v2246 = vadd.f32 %v2174, %v2245
    %v2247 = vpop.f32.mrf.mxu0
    %2248 = vdwg.mxu0
    %vm2249 = vcmask 130048
    %2250 = vst.msk [vmem:[#allocation10] sm:$0xff] %vm2249, %v2246
    // Predicated region
    $region66: #{tpu_custom_call.1} parent=1 // pred_check
      _
    $region67: #{tpu_custom_call.1} parent=1 // pred_check_branch
      %2252 = sbr.rel (0) target = $region69
    $region68: #{tpu_custom_call.1} parent=1 // pred_region
      %s2254 = ssub.s32 128, 128
      %2255 = vsyncadd [#allocation4], %s2254
      %s2257 = sshll.u32 [#allocation10], 4
      %s2258 = int_to_ptr.vmem [resolvable:$true] %s2257
      %2260 = dma.vmem_to_hbm [thread:$0]  %s2258, 128, %s12, [#allocation4]
    $region69: #{tpu_custom_call.1} parent=1 // pred_fallthru
      _
    // Predicated region
    $region70: #{tpu_custom_call.1} parent=1 // pred_check
      _
    $region71: #{tpu_custom_call.1} parent=1 // pred_check_branch
      %2262 = sbr.rel (0) target = $region73
    $region72: #{tpu_custom_call.1} parent=1 // pred_region
      %2263 = dma.done [#allocation4], 128
    $region73: #{tpu_custom_call.1} parent=1 // pred_fallthru
      _
    %2264 = vsyncpa [#allocation3], 1
    %2265 = vsyncpa [#allocation6], 1
    %2266 = vsyncpa [#allocation9], 1
    %2267 = vsyncpa [#allocation4], 1

</llo_original>
